<compile_context>
chip_gen: v5e
topology: v5e:2x2
jax: 0.10.0
libtpu: 0.0.40
codegen_flags: <defaults>
</compile_context>

<pallas_src>
import jax
import jax.numpy as jnp
from jax.experimental import pallas as pl
from jax.experimental.pallas import tpu as pltpu


def _gate_width(H):
    """Lane width of one packed gate group: >= 2H, multiple of 128 (vreg lane width)."""
    return max(128, -(-2 * H // 128) * 128)


# ----------------------------------------------------------------------------
# Kernel: one grid step, whole sequence. Gate order is PyTorch's [i, f, g, o];
# each 128-lane gate group is [fwd H | bwd H | zero pad].
# ----------------------------------------------------------------------------
def _bilstm_kernel(x2d_ref, h0_ref, c0_ref, wih_ref, whh_ref, b_ref, out_ref):
    B, GW = h0_ref.shape           # GW = padded per-gate group width (128 here)
    T, _, H2 = out_ref.shape       # H2 = 2*H
    H = H2 // 2
    G4 = 4 * GW

    # (1) One fused input projection for all timesteps and both directions (bias folded).
    #     Row t*B+b of xg holds gate pre-activations of input time t for BOTH directions.
    xg = (
        jnp.dot(x2d_ref[...], wih_ref[...], preferred_element_type=jnp.float32)
        + b_ref[...]
    )                               # (T*B, 4*GW)

    # (2) Time-align the backward direction with a static lane select (fwd lanes take
    #     input time s, bwd lanes take input time T-1-s). Independent of h/c, so this
    #     sits off the serial critical path.
    lane = jax.lax.broadcasted_iota(jnp.int32, (B, G4), 1) % GW
    dir_mask = lane < H             # True -> forward-direction column
    gx = []
    for s in range(T):
        xs_f = xg[s * B:(s + 1) * B]
        xs_b = xg[(T - 1 - s) * B:(T - s) * B]
        gx.append(jnp.where(dir_mask, xs_f, xs_b))

    whh = whh_ref[...]              # (GW, 4*GW) block-structured, gate-packed
    h = h0_ref[...]                 # (B, GW) = [h_fwd | h_bwd | 0-pad]
    c = c0_ref[...]                 # (B, GW)

    # (3) Serial recurrence, fully unrolled (T small and static): one
    #     (B, GW) @ (GW, 4*GW) MXU dot per step covers both directions; every gate
    #     slice below starts at a vreg (128-lane) boundary.
    hs = []
    for s in range(T):
        gates = gx[s] + jnp.dot(h, whh, preferred_element_type=jnp.float32)  # (B, 4GW)
        i = jax.nn.sigmoid(gates[:, 0 * GW:1 * GW])
        f = jax.nn.sigmoid(gates[:, 1 * GW:2 * GW])
        g = jnp.tanh(gates[:, 2 * GW:3 * GW])
        o = jax.nn.sigmoid(gates[:, 3 * GW:4 * GW])
        c = f * c + i * g
        h = o * jnp.tanh(c)
        hs.append(h)

    # (4) One bulk store: output time t = [fwd state of step t | bwd state of step T-1-t].
    out_mask = jax.lax.broadcasted_iota(jnp.int32, (B, GW), 1) < H
    rows = [jnp.where(out_mask, hs[t], hs[T - 1 - t])[:, :H2] for t in range(T)]
    out_ref[...] = jnp.stack(rows, axis=0).astype(out_ref.dtype)


# ----------------------------------------------------------------------------
# One-time packing helpers (call at init time, NOT in the per-call hot path).
# ----------------------------------------------------------------------------
def _pack_cols(w_f, w_b, H):
    """(K, 4H) x 2 -> (K, 4*GW): group k = [fwd gate k | bwd gate k | zero pad]."""
    K = w_f.shape[0]
    GW = _gate_width(H)
    w4f = w_f.reshape(K, 4, H)
    w4b = w_b.reshape(K, 4, H)
    pad = jnp.zeros((K, 4, GW - 2 * H), w_f.dtype)
    return jnp.concatenate([w4f, w4b, pad], axis=2).reshape(K, 4 * GW)


def pack_params(params, H):
    """Pack per-direction LSTM weights once into the fused, vreg-aligned layout."""
    (wih_f, whh_f, b_f), (wih_b, whh_b, b_b) = params
    GW = _gate_width(H)
    wih_p = _pack_cols(wih_f, wih_b, H)                    # (E, 4*GW)
    whh_p = jnp.zeros((GW, 4 * GW), jnp.float32)           # rows = packed h lanes
    whh_p = whh_p.at[:H].set(_pack_cols(whh_f, jnp.zeros_like(whh_f), H))
    whh_p = whh_p.at[H:2 * H].set(_pack_cols(jnp.zeros_like(whh_b), whh_b, H))
    b_p = _pack_cols(b_f, b_b, H)                          # (1, 4*GW), pad lanes = 0
    return wih_p, whh_p, b_p


def pack_hidden(hidden, H):
    """(h0, c0) each (2, B, H) -> packed (B, GW) with lanes [fwd | bwd | 0-pad]."""
    GW = _gate_width(H)

    def pk(s):
        B = s.shape[1]
        out = jnp.zeros((B, GW), jnp.float32)
        out = out.at[:, :H].set(s[0])
        out = out.at[:, H:2 * H].set(s[1])
        return out

    h0, c0 = hidden
    return pk(h0), pk(c0)


# ----------------------------------------------------------------------------
# Forward wrapper: the jitted path is a free reshape + the pallas_call only.
# ----------------------------------------------------------------------------
def rnn_encoder_forward(inputs, hidden_packed, packed_params):
    """Bidirectional single-layer LSTM. inputs: (T, B, E); hidden/params pre-packed."""
    T, B, E = inputs.shape
    wih_p, whh_p, b_p = packed_params
    h0p, c0p = hidden_packed
    GW = h0p.shape[-1]
    H2 = 2 * (b_p.shape[-1] // (4 * GW)) * 0 + 0  # placeholder, real H below
    # H is implied by the packed layout; recover it from the raw hidden width request:
    # packed hidden lanes [0:H]=fwd, [H:2H]=bwd; callers pack via pack_hidden(H).
    # We carry H through the output shape instead:
    H = _recover_H(GW, whh_p)  # static python int
    del H2

    x2d = inputs.reshape(T * B, E)   # row-major bitcast: free in XLA

    out = pl.pallas_call(
        _bilstm_kernel,
        grid=(1,),
        in_specs=[
            pl.BlockSpec((T * B, E), lambda i: (0, 0)),       # x, all timesteps
            pl.BlockSpec((B, GW), lambda i: (0, 0)),          # h0 packed
            pl.BlockSpec((B, GW), lambda i: (0, 0)),          # c0 packed
            pl.BlockSpec((E, 4 * GW), lambda i: (0, 0)),      # W_ih packed
            pl.BlockSpec((GW, 4 * GW), lambda i: (0, 0)),     # W_hh packed (block-struct)
            pl.BlockSpec((1, 4 * GW), lambda i: (0, 0)),      # bias packed (b_ih + b_hh)
        ],
        out_specs=pl.BlockSpec((T, B, 2 * H), lambda i: (0, 0, 0)),
        out_shape=jax.ShapeDtypeStruct((T, B, 2 * H), inputs.dtype),
        compiler_params=pltpu.CompilerParams(
            dimension_semantics=("arbitrary",),
        ),
    )(x2d, h0p, c0p, wih_p, whh_p, b_p)

    return out  # (T, B, 2H) = concat([fwd, bwd], -1), torch bidirectional convention


def _recover_H(GW, whh_p):
    # Static helper: hidden size is encoded in the global config; at these shapes
    # H = (number of columns per gate group actually used) / 2. We store it on the
    # packed whh as a python attribute-free convention: 4*GW columns, 2H used lanes.
    # For this script H is fixed by the config below.
    return _HIDDEN_SIZE


# ----------------------------------------------------------------------------
# Pure-JAX reference (lax.scan) to validate kernel + packing end-to-end.
# ----------------------------------------------------------------------------
def _lstm_ref_one_dir(x, h0, c0, wih, whh, b):
    def step(carry, xt):
        h, c = carry
        gates = xt @ wih + h @ whh + b[0]
        H = h.shape[-1]
        i = jax.nn.sigmoid(gates[:, 0 * H:1 * H])
        f = jax.nn.sigmoid(gates[:, 1 * H:2 * H])
        g = jnp.tanh(gates[:, 2 * H:3 * H])
        o = jax.nn.sigmoid(gates[:, 3 * H:4 * H])
        c_new = f * c + i * g
        h_new = o * jnp.tanh(c_new)
        return (h_new, c_new), h_new

    _, hs = jax.lax.scan(step, (h0, c0), x)
    return hs


def rnn_encoder_reference(inputs, hidden, params):
    h0, c0 = hidden
    (wih_f, whh_f, b_f), (wih_b, whh_b, b_b) = params
    out_f = _lstm_ref_one_dir(inputs, h0[0], c0[0], wih_f, whh_f, b_f)
    out_b = _lstm_ref_one_dir(inputs[::-1], h0[1], c0[1], wih_b, whh_b, b_b)[::-1]
    return jnp.concatenate([out_f, out_b], axis=-1)


# ----------------------------------------------------------------------------
# Deterministic parameter init (PyTorch LSTM init: U(-1/sqrt(H), 1/sqrt(H))).
# Weights stored transposed vs. torch: (E, 4H) / (H, 4H); bias = b_ih + b_hh.
# ----------------------------------------------------------------------------
def init_params(key, E, H):
    bound = 1.0 / jnp.sqrt(jnp.float32(H))

    def one_dir(k):
        k1, k2, k3, k4 = jax.random.split(k, 4)
        wih = jax.random.uniform(k1, (E, 4 * H), jnp.float32, -bound, bound)
        whh = jax.random.uniform(k2, (H, 4 * H), jnp.float32, -bound, bound)
        b_ih = jax.random.uniform(k3, (4 * H,), jnp.float32, -bound, bound)
        b_hh = jax.random.uniform(k4, (4 * H,), jnp.float32, -bound, bound)
        b = (b_ih + b_hh).reshape(1, 4 * H)
        return wih, whh, b

    kf, kb = jax.random.split(key)
    return one_dir(kf), one_dir(kb)


# config: embedding_size=32, hidden_size=32, lstm_layer=1, bidirectional=True
_HIDDEN_SIZE = 32

if __name__ == "__main__":
    T, B, E, H = 8, 2, 32, _HIDDEN_SIZE

    key = jax.random.PRNGKey(0)
    k_x, k_p, k_h, k_c = jax.random.split(key, 4)

    inputs = jax.random.normal(k_x, (T, B, E), jnp.float32)
    # initHidden would give zeros; use small non-zero states to also exercise packing.
    h0 = 0.1 * jax.random.normal(k_h, (2, B, H), jnp.float32)
    c0 = 0.1 * jax.random.normal(k_c, (2, B, H), jnp.float32)
    params = init_params(k_p, E, H)

    # --- one-time packing (init time, outside the jitted forward path) ---
    packed_params = jax.tree_util.tree_map(
        jax.block_until_ready, pack_params(params, H))
    hidden_packed = jax.tree_util.tree_map(
        jax.block_until_ready, pack_hidden((h0, c0), H))

    fwd = jax.jit(rnn_encoder_forward)
    out = fwd(inputs, hidden_packed, packed_params)
    out = jax.block_until_ready(out)

    ref = rnn_encoder_reference(inputs, (h0, c0), params)
    assert out.shape == (T, B, 2 * H), out.shape
    assert jnp.allclose(out, ref, atol=1e-5, rtol=1e-5), \
        float(jnp.max(jnp.abs(out - ref)))

    print("KERNEL_OK")
</pallas_src>

<mosaic_0001>
module attributes {stable_mosaic.version = 11 : i64} {
  func.func @_bilstm_kernel(%arg0: i32, %arg1: memref<16x32xf32, #tpu.memory_space<vmem>>, %arg2: memref<2x128xf32, #tpu.memory_space<vmem>>, %arg3: memref<2x128xf32, #tpu.memory_space<vmem>>, %arg4: memref<32x512xf32, #tpu.memory_space<vmem>>, %arg5: memref<128x512xf32, #tpu.memory_space<vmem>>, %arg6: memref<1x512xf32, #tpu.memory_space<vmem>>, %arg7: memref<8x2x64xf32, #tpu.memory_space<vmem>>) attributes {dimension_semantics = [#tpu.dimension_semantics<arbitrary>], iteration_bounds = array<i64: 1>, scalar_prefetch = 0 : i64, scratch_operands = 0 : i64, tpu.core_type = #tpu.core_type<tc>, window_params = [{pipeline_mode = #tpu.pipeline_mode<synchronous>, transform_indices = @transform_0, window_bounds = array<i64: 16, 32>}, {pipeline_mode = #tpu.pipeline_mode<synchronous>, transform_indices = @transform_1, window_bounds = array<i64: 2, 128>}, {pipeline_mode = #tpu.pipeline_mode<synchronous>, transform_indices = @transform_2, window_bounds = array<i64: 2, 128>}, {pipeline_mode = #tpu.pipeline_mode<synchronous>, transform_indices = @transform_3, window_bounds = array<i64: 32, 512>}, {pipeline_mode = #tpu.pipeline_mode<synchronous>, transform_indices = @transform_4, window_bounds = array<i64: 128, 512>}, {pipeline_mode = #tpu.pipeline_mode<synchronous>, transform_indices = @transform_5, window_bounds = array<i64: 1, 512>}, {pipeline_mode = #tpu.pipeline_mode<synchronous>, transform_indices = @transform_6, window_bounds = array<i64: 8, 2, 64>}]} {
    %c0 = arith.constant 0 : index
    %c0_0 = arith.constant 0 : index
    %0 = vector.load %arg1[%c0, %c0_0] : memref<16x32xf32, #tpu.memory_space<vmem>>, vector<16x32xf32>
    %c0_1 = arith.constant 0 : index
    %c0_2 = arith.constant 0 : index
    %1 = vector.load %arg4[%c0_1, %c0_2] : memref<32x512xf32, #tpu.memory_space<vmem>>, vector<32x512xf32>
    %cst = arith.constant dense<0.000000e+00> : vector<16x512xf32>
    %2 = tpu.matmul %0, %1, %cst {dimension_numbers = #tpu.dot_dimension_numbers<[1], [0], [0], [1], [0, 0, 1, 1], [], []>} : vector<16x32xf32>, vector<32x512xf32>, vector<16x512xf32> -> vector<16x512xf32>
    %c0_3 = arith.constant 0 : index
    %c0_4 = arith.constant 0 : index
    %3 = vector.load %arg6[%c0_3, %c0_4] : memref<1x512xf32, #tpu.memory_space<vmem>>, vector<1x512xf32>
    %4 = vector.broadcast %3 : vector<1x512xf32> to vector<16x512xf32>
    %5 = arith.addf %2, %4 : vector<16x512xf32>
    %6 = tpu.iota {dimensions = array<i32: 1>} : vector<2x512xi32>
    %c128_i32 = arith.constant 128 : i32
    %c0_i32 = arith.constant 0 : i32
    %7 = arith.cmpi eq, %c128_i32, %c0_i32 : i32
    %c1_i32 = arith.constant 1 : i32
    %8 = arith.select %7, %c1_i32, %c128_i32 : i32
    %9 = vector.broadcast %8 : i32 to vector<2x512xi32>
    %10 = arith.remsi %6, %9 : vector<2x512xi32>
    %c0_i32_5 = arith.constant 0 : i32
    %11 = vector.broadcast %c0_i32_5 : i32 to vector<2x512xi32>
    %12 = arith.cmpi ne, %10, %11 : vector<2x512xi32>
    %c0_i32_6 = arith.constant 0 : i32
    %13 = vector.broadcast %c0_i32_6 : i32 to vector<2x512xi32>
    %14 = arith.cmpi slt, %10, %13 : vector<2x512xi32>
    %c0_i32_7 = arith.constant 0 : i32
    %15 = arith.cmpi slt, %8, %c0_i32_7 : i32
    %16 = vector.broadcast %15 : i1 to vector<2x512xi1>
    %17 = vector.broadcast %16 : vector<2x512xi1> to vector<2x512xi1>
    %18 = arith.xori %14, %17 : vector<2x512xi1>
    %19 = arith.andi %18, %12 : vector<2x512xi1>
    %20 = vector.broadcast %8 : i32 to vector<2x512xi32>
    %21 = arith.addi %10, %20 : vector<2x512xi32>
    %22 = arith.select %19, %21, %10 : vector<2x512xi1>, vector<2x512xi32>
    %c32_i32 = arith.constant 32 : i32
    %23 = vector.broadcast %c32_i32 : i32 to vector<2x512xi32>
    %24 = arith.cmpi slt, %22, %23 : vector<2x512xi32>
    %25 = vector.extract_strided_slice %5 {offsets = [0, 0], sizes = [2, 512], strides = [1, 1]} : vector<16x512xf32> to vector<2x512xf32>
    %26 = vector.extract_strided_slice %5 {offsets = [14, 0], sizes = [2, 512], strides = [1, 1]} : vector<16x512xf32> to vector<2x512xf32>
    %27 = arith.select %24, %25, %26 : vector<2x512xi1>, vector<2x512xf32>
    %28 = vector.extract_strided_slice %5 {offsets = [2, 0], sizes = [2, 512], strides = [1, 1]} : vector<16x512xf32> to vector<2x512xf32>
    %29 = vector.extract_strided_slice %5 {offsets = [12, 0], sizes = [2, 512], strides = [1, 1]} : vector<16x512xf32> to vector<2x512xf32>
    %30 = arith.select %24, %28, %29 : vector<2x512xi1>, vector<2x512xf32>
    %31 = vector.extract_strided_slice %5 {offsets = [4, 0], sizes = [2, 512], strides = [1, 1]} : vector<16x512xf32> to vector<2x512xf32>
    %32 = vector.extract_strided_slice %5 {offsets = [10, 0], sizes = [2, 512], strides = [1, 1]} : vector<16x512xf32> to vector<2x512xf32>
    %33 = arith.select %24, %31, %32 : vector<2x512xi1>, vector<2x512xf32>
    %34 = vector.extract_strided_slice %5 {offsets = [6, 0], sizes = [2, 512], strides = [1, 1]} : vector<16x512xf32> to vector<2x512xf32>
    %35 = vector.extract_strided_slice %5 {offsets = [8, 0], sizes = [2, 512], strides = [1, 1]} : vector<16x512xf32> to vector<2x512xf32>
    %36 = arith.select %24, %34, %35 : vector<2x512xi1>, vector<2x512xf32>
    %37 = vector.extract_strided_slice %5 {offsets = [8, 0], sizes = [2, 512], strides = [1, 1]} : vector<16x512xf32> to vector<2x512xf32>
    %38 = vector.extract_strided_slice %5 {offsets = [6, 0], sizes = [2, 512], strides = [1, 1]} : vector<16x512xf32> to vector<2x512xf32>
    %39 = arith.select %24, %37, %38 : vector<2x512xi1>, vector<2x512xf32>
    %40 = vector.extract_strided_slice %5 {offsets = [10, 0], sizes = [2, 512], strides = [1, 1]} : vector<16x512xf32> to vector<2x512xf32>
    %41 = vector.extract_strided_slice %5 {offsets = [4, 0], sizes = [2, 512], strides = [1, 1]} : vector<16x512xf32> to vector<2x512xf32>
    %42 = arith.select %24, %40, %41 : vector<2x512xi1>, vector<2x512xf32>
    %43 = vector.extract_strided_slice %5 {offsets = [12, 0], sizes = [2, 512], strides = [1, 1]} : vector<16x512xf32> to vector<2x512xf32>
    %44 = vector.extract_strided_slice %5 {offsets = [2, 0], sizes = [2, 512], strides = [1, 1]} : vector<16x512xf32> to vector<2x512xf32>
    %45 = arith.select %24, %43, %44 : vector<2x512xi1>, vector<2x512xf32>
    %46 = vector.extract_strided_slice %5 {offsets = [14, 0], sizes = [2, 512], strides = [1, 1]} : vector<16x512xf32> to vector<2x512xf32>
    %47 = vector.extract_strided_slice %5 {offsets = [0, 0], sizes = [2, 512], strides = [1, 1]} : vector<16x512xf32> to vector<2x512xf32>
    %48 = arith.select %24, %46, %47 : vector<2x512xi1>, vector<2x512xf32>
    %c0_8 = arith.constant 0 : index
    %c0_9 = arith.constant 0 : index
    %49 = vector.load %arg5[%c0_8, %c0_9] : memref<128x512xf32, #tpu.memory_space<vmem>>, vector<128x512xf32>
    %c0_10 = arith.constant 0 : index
    %c0_11 = arith.constant 0 : index
    %50 = vector.load %arg2[%c0_10, %c0_11] : memref<2x128xf32, #tpu.memory_space<vmem>>, vector<2x128xf32>
    %c0_12 = arith.constant 0 : index
    %c0_13 = arith.constant 0 : index
    %51 = vector.load %arg3[%c0_12, %c0_13] : memref<2x128xf32, #tpu.memory_space<vmem>>, vector<2x128xf32>
    %cst_14 = arith.constant dense<0.000000e+00> : vector<2x512xf32>
    %52 = tpu.matmul %50, %49, %cst_14 {dimension_numbers = #tpu.dot_dimension_numbers<[1], [0], [0], [1], [0, 0, 1, 1], [], []>} : vector<2x128xf32>, vector<128x512xf32>, vector<2x512xf32> -> vector<2x512xf32>
    %53 = arith.addf %27, %52 : vector<2x512xf32>
    %54 = vector.extract_strided_slice %53 {offsets = [0, 0], sizes = [2, 128], strides = [1, 1]} : vector<2x512xf32> to vector<2x128xf32>
    %55 = arith.negf %54 : vector<2x128xf32>
    %56 = math.exp %55 : vector<2x128xf32>
    %cst_15 = arith.constant 1.000000e+00 : f32
    %57 = vector.broadcast %cst_15 : f32 to vector<2x128xf32>
    %58 = arith.addf %57, %56 : vector<2x128xf32>
    %59 = arith.divf %57, %58 : vector<2x128xf32>
    %60 = vector.extract_strided_slice %53 {offsets = [0, 128], sizes = [2, 128], strides = [1, 1]} : vector<2x512xf32> to vector<2x128xf32>
    %61 = arith.negf %60 : vector<2x128xf32>
    %62 = math.exp %61 : vector<2x128xf32>
    %cst_16 = arith.constant 1.000000e+00 : f32
    %63 = vector.broadcast %cst_16 : f32 to vector<2x128xf32>
    %64 = arith.addf %63, %62 : vector<2x128xf32>
    %65 = arith.divf %63, %64 : vector<2x128xf32>
    %66 = vector.extract_strided_slice %53 {offsets = [0, 256], sizes = [2, 128], strides = [1, 1]} : vector<2x512xf32> to vector<2x128xf32>
    %67 = math.tanh %66 : vector<2x128xf32>
    %68 = vector.extract_strided_slice %53 {offsets = [0, 384], sizes = [2, 128], strides = [1, 1]} : vector<2x512xf32> to vector<2x128xf32>
    %69 = arith.negf %68 : vector<2x128xf32>
    %70 = math.exp %69 : vector<2x128xf32>
    %cst_17 = arith.constant 1.000000e+00 : f32
    %71 = vector.broadcast %cst_17 : f32 to vector<2x128xf32>
    %72 = arith.addf %71, %70 : vector<2x128xf32>
    %73 = arith.divf %71, %72 : vector<2x128xf32>
    %74 = arith.mulf %65, %51 : vector<2x128xf32>
    %75 = arith.mulf %59, %67 : vector<2x128xf32>
    %76 = arith.addf %74, %75 : vector<2x128xf32>
    %77 = math.tanh %76 : vector<2x128xf32>
    %78 = arith.mulf %73, %77 : vector<2x128xf32>
    %cst_18 = arith.constant dense<0.000000e+00> : vector<2x512xf32>
    %79 = tpu.matmul %78, %49, %cst_18 {dimension_numbers = #tpu.dot_dimension_numbers<[1], [0], [0], [1], [0, 0, 1, 1], [], []>} : vector<2x128xf32>, vector<128x512xf32>, vector<2x512xf32> -> vector<2x512xf32>
    %80 = arith.addf %30, %79 : vector<2x512xf32>
    %81 = vector.extract_strided_slice %80 {offsets = [0, 0], sizes = [2, 128], strides = [1, 1]} : vector<2x512xf32> to vector<2x128xf32>
    %82 = arith.negf %81 : vector<2x128xf32>
    %83 = math.exp %82 : vector<2x128xf32>
    %cst_19 = arith.constant 1.000000e+00 : f32
    %84 = vector.broadcast %cst_19 : f32 to vector<2x128xf32>
    %85 = arith.addf %84, %83 : vector<2x128xf32>
    %86 = arith.divf %84, %85 : vector<2x128xf32>
    %87 = vector.extract_strided_slice %80 {offsets = [0, 128], sizes = [2, 128], strides = [1, 1]} : vector<2x512xf32> to vector<2x128xf32>
    %88 = arith.negf %87 : vector<2x128xf32>
    %89 = math.exp %88 : vector<2x128xf32>
    %cst_20 = arith.constant 1.000000e+00 : f32
    %90 = vector.broadcast %cst_20 : f32 to vector<2x128xf32>
    %91 = arith.addf %90, %89 : vector<2x128xf32>
    %92 = arith.divf %90, %91 : vector<2x128xf32>
    %93 = vector.extract_strided_slice %80 {offsets = [0, 256], sizes = [2, 128], strides = [1, 1]} : vector<2x512xf32> to vector<2x128xf32>
    %94 = math.tanh %93 : vector<2x128xf32>
    %95 = vector.extract_strided_slice %80 {offsets = [0, 384], sizes = [2, 128], strides = [1, 1]} : vector<2x512xf32> to vector<2x128xf32>
    %96 = arith.negf %95 : vector<2x128xf32>
    %97 = math.exp %96 : vector<2x128xf32>
    %cst_21 = arith.constant 1.000000e+00 : f32
    %98 = vector.broadcast %cst_21 : f32 to vector<2x128xf32>
    %99 = arith.addf %98, %97 : vector<2x128xf32>
    %100 = arith.divf %98, %99 : vector<2x128xf32>
    %101 = arith.mulf %92, %76 : vector<2x128xf32>
    %102 = arith.mulf %86, %94 : vector<2x128xf32>
    %103 = arith.addf %101, %102 : vector<2x128xf32>
    %104 = math.tanh %103 : vector<2x128xf32>
    %105 = arith.mulf %100, %104 : vector<2x128xf32>
    %cst_22 = arith.constant dense<0.000000e+00> : vector<2x512xf32>
    %106 = tpu.matmul %105, %49, %cst_22 {dimension_numbers = #tpu.dot_dimension_numbers<[1], [0], [0], [1], [0, 0, 1, 1], [], []>} : vector<2x128xf32>, vector<128x512xf32>, vector<2x512xf32> -> vector<2x512xf32>
    %107 = arith.addf %33, %106 : vector<2x512xf32>
    %108 = vector.extract_strided_slice %107 {offsets = [0, 0], sizes = [2, 128], strides = [1, 1]} : vector<2x512xf32> to vector<2x128xf32>
    %109 = arith.negf %108 : vector<2x128xf32>
    %110 = math.exp %109 : vector<2x128xf32>
    %cst_23 = arith.constant 1.000000e+00 : f32
    %111 = vector.broadcast %cst_23 : f32 to vector<2x128xf32>
    %112 = arith.addf %111, %110 : vector<2x128xf32>
    %113 = arith.divf %111, %112 : vector<2x128xf32>
    %114 = vector.extract_strided_slice %107 {offsets = [0, 128], sizes = [2, 128], strides = [1, 1]} : vector<2x512xf32> to vector<2x128xf32>
    %115 = arith.negf %114 : vector<2x128xf32>
    %116 = math.exp %115 : vector<2x128xf32>
    %cst_24 = arith.constant 1.000000e+00 : f32
    %117 = vector.broadcast %cst_24 : f32 to vector<2x128xf32>
    %118 = arith.addf %117, %116 : vector<2x128xf32>
    %119 = arith.divf %117, %118 : vector<2x128xf32>
    %120 = vector.extract_strided_slice %107 {offsets = [0, 256], sizes = [2, 128], strides = [1, 1]} : vector<2x512xf32> to vector<2x128xf32>
    %121 = math.tanh %120 : vector<2x128xf32>
    %122 = vector.extract_strided_slice %107 {offsets = [0, 384], sizes = [2, 128], strides = [1, 1]} : vector<2x512xf32> to vector<2x128xf32>
    %123 = arith.negf %122 : vector<2x128xf32>
    %124 = math.exp %123 : vector<2x128xf32>
    %cst_25 = arith.constant 1.000000e+00 : f32
    %125 = vector.broadcast %cst_25 : f32 to vector<2x128xf32>
    %126 = arith.addf %125, %124 : vector<2x128xf32>
    %127 = arith.divf %125, %126 : vector<2x128xf32>
    %128 = arith.mulf %119, %103 : vector<2x128xf32>
    %129 = arith.mulf %113, %121 : vector<2x128xf32>
    %130 = arith.addf %128, %129 : vector<2x128xf32>
    %131 = math.tanh %130 : vector<2x128xf32>
    %132 = arith.mulf %127, %131 : vector<2x128xf32>
    %cst_26 = arith.constant dense<0.000000e+00> : vector<2x512xf32>
    %133 = tpu.matmul %132, %49, %cst_26 {dimension_numbers = #tpu.dot_dimension_numbers<[1], [0], [0], [1], [0, 0, 1, 1], [], []>} : vector<2x128xf32>, vector<128x512xf32>, vector<2x512xf32> -> vector<2x512xf32>
    %134 = arith.addf %36, %133 : vector<2x512xf32>
    %135 = vector.extract_strided_slice %134 {offsets = [0, 0], sizes = [2, 128], strides = [1, 1]} : vector<2x512xf32> to vector<2x128xf32>
    %136 = arith.negf %135 : vector<2x128xf32>
    %137 = math.exp %136 : vector<2x128xf32>
    %cst_27 = arith.constant 1.000000e+00 : f32
    %138 = vector.broadcast %cst_27 : f32 to vector<2x128xf32>
    %139 = arith.addf %138, %137 : vector<2x128xf32>
    %140 = arith.divf %138, %139 : vector<2x128xf32>
    %141 = vector.extract_strided_slice %134 {offsets = [0, 128], sizes = [2, 128], strides = [1, 1]} : vector<2x512xf32> to vector<2x128xf32>
    %142 = arith.negf %141 : vector<2x128xf32>
    %143 = math.exp %142 : vector<2x128xf32>
    %cst_28 = arith.constant 1.000000e+00 : f32
    %144 = vector.broadcast %cst_28 : f32 to vector<2x128xf32>
    %145 = arith.addf %144, %143 : vector<2x128xf32>
    %146 = arith.divf %144, %145 : vector<2x128xf32>
    %147 = vector.extract_strided_slice %134 {offsets = [0, 256], sizes = [2, 128], strides = [1, 1]} : vector<2x512xf32> to vector<2x128xf32>
    %148 = math.tanh %147 : vector<2x128xf32>
    %149 = vector.extract_strided_slice %134 {offsets = [0, 384], sizes = [2, 128], strides = [1, 1]} : vector<2x512xf32> to vector<2x128xf32>
    %150 = arith.negf %149 : vector<2x128xf32>
    %151 = math.exp %150 : vector<2x128xf32>
    %cst_29 = arith.constant 1.000000e+00 : f32
    %152 = vector.broadcast %cst_29 : f32 to vector<2x128xf32>
    %153 = arith.addf %152, %151 : vector<2x128xf32>
    %154 = arith.divf %152, %153 : vector<2x128xf32>
    %155 = arith.mulf %146, %130 : vector<2x128xf32>
    %156 = arith.mulf %140, %148 : vector<2x128xf32>
    %157 = arith.addf %155, %156 : vector<2x128xf32>
    %158 = math.tanh %157 : vector<2x128xf32>
    %159 = arith.mulf %154, %158 : vector<2x128xf32>
    %cst_30 = arith.constant dense<0.000000e+00> : vector<2x512xf32>
    %160 = tpu.matmul %159, %49, %cst_30 {dimension_numbers = #tpu.dot_dimension_numbers<[1], [0], [0], [1], [0, 0, 1, 1], [], []>} : vector<2x128xf32>, vector<128x512xf32>, vector<2x512xf32> -> vector<2x512xf32>
    %161 = arith.addf %39, %160 : vector<2x512xf32>
    %162 = vector.extract_strided_slice %161 {offsets = [0, 0], sizes = [2, 128], strides = [1, 1]} : vector<2x512xf32> to vector<2x128xf32>
    %163 = arith.negf %162 : vector<2x128xf32>
    %164 = math.exp %163 : vector<2x128xf32>
    %cst_31 = arith.constant 1.000000e+00 : f32
    %165 = vector.broadcast %cst_31 : f32 to vector<2x128xf32>
    %166 = arith.addf %165, %164 : vector<2x128xf32>
    %167 = arith.divf %165, %166 : vector<2x128xf32>
    %168 = vector.extract_strided_slice %161 {offsets = [0, 128], sizes = [2, 128], strides = [1, 1]} : vector<2x512xf32> to vector<2x128xf32>
    %169 = arith.negf %168 : vector<2x128xf32>
    %170 = math.exp %169 : vector<2x128xf32>
    %cst_32 = arith.constant 1.000000e+00 : f32
    %171 = vector.broadcast %cst_32 : f32 to vector<2x128xf32>
    %172 = arith.addf %171, %170 : vector<2x128xf32>
    %173 = arith.divf %171, %172 : vector<2x128xf32>
    %174 = vector.extract_strided_slice %161 {offsets = [0, 256], sizes = [2, 128], strides = [1, 1]} : vector<2x512xf32> to vector<2x128xf32>
    %175 = math.tanh %174 : vector<2x128xf32>
    %176 = vector.extract_strided_slice %161 {offsets = [0, 384], sizes = [2, 128], strides = [1, 1]} : vector<2x512xf32> to vector<2x128xf32>
    %177 = arith.negf %176 : vector<2x128xf32>
    %178 = math.exp %177 : vector<2x128xf32>
    %cst_33 = arith.constant 1.000000e+00 : f32
    %179 = vector.broadcast %cst_33 : f32 to vector<2x128xf32>
    %180 = arith.addf %179, %178 : vector<2x128xf32>
    %181 = arith.divf %179, %180 : vector<2x128xf32>
    %182 = arith.mulf %173, %157 : vector<2x128xf32>
    %183 = arith.mulf %167, %175 : vector<2x128xf32>
    %184 = arith.addf %182, %183 : vector<2x128xf32>
    %185 = math.tanh %184 : vector<2x128xf32>
    %186 = arith.mulf %181, %185 : vector<2x128xf32>
    %cst_34 = arith.constant dense<0.000000e+00> : vector<2x512xf32>
    %187 = tpu.matmul %186, %49, %cst_34 {dimension_numbers = #tpu.dot_dimension_numbers<[1], [0], [0], [1], [0, 0, 1, 1], [], []>} : vector<2x128xf32>, vector<128x512xf32>, vector<2x512xf32> -> vector<2x512xf32>
    %188 = arith.addf %42, %187 : vector<2x512xf32>
    %189 = vector.extract_strided_slice %188 {offsets = [0, 0], sizes = [2, 128], strides = [1, 1]} : vector<2x512xf32> to vector<2x128xf32>
    %190 = arith.negf %189 : vector<2x128xf32>
    %191 = math.exp %190 : vector<2x128xf32>
    %cst_35 = arith.constant 1.000000e+00 : f32
    %192 = vector.broadcast %cst_35 : f32 to vector<2x128xf32>
    %193 = arith.addf %192, %191 : vector<2x128xf32>
    %194 = arith.divf %192, %193 : vector<2x128xf32>
    %195 = vector.extract_strided_slice %188 {offsets = [0, 128], sizes = [2, 128], strides = [1, 1]} : vector<2x512xf32> to vector<2x128xf32>
    %196 = arith.negf %195 : vector<2x128xf32>
    %197 = math.exp %196 : vector<2x128xf32>
    %cst_36 = arith.constant 1.000000e+00 : f32
    %198 = vector.broadcast %cst_36 : f32 to vector<2x128xf32>
    %199 = arith.addf %198, %197 : vector<2x128xf32>
    %200 = arith.divf %198, %199 : vector<2x128xf32>
    %201 = vector.extract_strided_slice %188 {offsets = [0, 256], sizes = [2, 128], strides = [1, 1]} : vector<2x512xf32> to vector<2x128xf32>
    %202 = math.tanh %201 : vector<2x128xf32>
    %203 = vector.extract_strided_slice %188 {offsets = [0, 384], sizes = [2, 128], strides = [1, 1]} : vector<2x512xf32> to vector<2x128xf32>
    %204 = arith.negf %203 : vector<2x128xf32>
    %205 = math.exp %204 : vector<2x128xf32>
    %cst_37 = arith.constant 1.000000e+00 : f32
    %206 = vector.broadcast %cst_37 : f32 to vector<2x128xf32>
    %207 = arith.addf %206, %205 : vector<2x128xf32>
    %208 = arith.divf %206, %207 : vector<2x128xf32>
    %209 = arith.mulf %200, %184 : vector<2x128xf32>
    %210 = arith.mulf %194, %202 : vector<2x128xf32>
    %211 = arith.addf %209, %210 : vector<2x128xf32>
    %212 = math.tanh %211 : vector<2x128xf32>
    %213 = arith.mulf %208, %212 : vector<2x128xf32>
    %cst_38 = arith.constant dense<0.000000e+00> : vector<2x512xf32>
    %214 = tpu.matmul %213, %49, %cst_38 {dimension_numbers = #tpu.dot_dimension_numbers<[1], [0], [0], [1], [0, 0, 1, 1], [], []>} : vector<2x128xf32>, vector<128x512xf32>, vector<2x512xf32> -> vector<2x512xf32>
    %215 = arith.addf %45, %214 : vector<2x512xf32>
    %216 = vector.extract_strided_slice %215 {offsets = [0, 0], sizes = [2, 128], strides = [1, 1]} : vector<2x512xf32> to vector<2x128xf32>
    %217 = arith.negf %216 : vector<2x128xf32>
    %218 = math.exp %217 : vector<2x128xf32>
    %cst_39 = arith.constant 1.000000e+00 : f32
    %219 = vector.broadcast %cst_39 : f32 to vector<2x128xf32>
    %220 = arith.addf %219, %218 : vector<2x128xf32>
    %221 = arith.divf %219, %220 : vector<2x128xf32>
    %222 = vector.extract_strided_slice %215 {offsets = [0, 128], sizes = [2, 128], strides = [1, 1]} : vector<2x512xf32> to vector<2x128xf32>
    %223 = arith.negf %222 : vector<2x128xf32>
    %224 = math.exp %223 : vector<2x128xf32>
    %cst_40 = arith.constant 1.000000e+00 : f32
    %225 = vector.broadcast %cst_40 : f32 to vector<2x128xf32>
    %226 = arith.addf %225, %224 : vector<2x128xf32>
    %227 = arith.divf %225, %226 : vector<2x128xf32>
    %228 = vector.extract_strided_slice %215 {offsets = [0, 256], sizes = [2, 128], strides = [1, 1]} : vector<2x512xf32> to vector<2x128xf32>
    %229 = math.tanh %228 : vector<2x128xf32>
    %230 = vector.extract_strided_slice %215 {offsets = [0, 384], sizes = [2, 128], strides = [1, 1]} : vector<2x512xf32> to vector<2x128xf32>
    %231 = arith.negf %230 : vector<2x128xf32>
    %232 = math.exp %231 : vector<2x128xf32>
    %cst_41 = arith.constant 1.000000e+00 : f32
    %233 = vector.broadcast %cst_41 : f32 to vector<2x128xf32>
    %234 = arith.addf %233, %232 : vector<2x128xf32>
    %235 = arith.divf %233, %234 : vector<2x128xf32>
    %236 = arith.mulf %227, %211 : vector<2x128xf32>
    %237 = arith.mulf %221, %229 : vector<2x128xf32>
    %238 = arith.addf %236, %237 : vector<2x128xf32>
    %239 = math.tanh %238 : vector<2x128xf32>
    %240 = arith.mulf %235, %239 : vector<2x128xf32>
    %cst_42 = arith.constant dense<0.000000e+00> : vector<2x512xf32>
    %241 = tpu.matmul %240, %49, %cst_42 {dimension_numbers = #tpu.dot_dimension_numbers<[1], [0], [0], [1], [0, 0, 1, 1], [], []>} : vector<2x128xf32>, vector<128x512xf32>, vector<2x512xf32> -> vector<2x512xf32>
    %242 = arith.addf %48, %241 : vector<2x512xf32>
    %243 = vector.extract_strided_slice %242 {offsets = [0, 0], sizes = [2, 128], strides = [1, 1]} : vector<2x512xf32> to vector<2x128xf32>
    %244 = arith.negf %243 : vector<2x128xf32>
    %245 = math.exp %244 : vector<2x128xf32>
    %cst_43 = arith.constant 1.000000e+00 : f32
    %246 = vector.broadcast %cst_43 : f32 to vector<2x128xf32>
    %247 = arith.addf %246, %245 : vector<2x128xf32>
    %248 = arith.divf %246, %247 : vector<2x128xf32>
    %249 = vector.extract_strided_slice %242 {offsets = [0, 128], sizes = [2, 128], strides = [1, 1]} : vector<2x512xf32> to vector<2x128xf32>
    %250 = arith.negf %249 : vector<2x128xf32>
    %251 = math.exp %250 : vector<2x128xf32>
    %cst_44 = arith.constant 1.000000e+00 : f32
    %252 = vector.broadcast %cst_44 : f32 to vector<2x128xf32>
    %253 = arith.addf %252, %251 : vector<2x128xf32>
    %254 = arith.divf %252, %253 : vector<2x128xf32>
    %255 = vector.extract_strided_slice %242 {offsets = [0, 256], sizes = [2, 128], strides = [1, 1]} : vector<2x512xf32> to vector<2x128xf32>
    %256 = math.tanh %255 : vector<2x128xf32>
    %257 = vector.extract_strided_slice %242 {offsets = [0, 384], sizes = [2, 128], strides = [1, 1]} : vector<2x512xf32> to vector<2x128xf32>
    %258 = arith.negf %257 : vector<2x128xf32>
    %259 = math.exp %258 : vector<2x128xf32>
    %cst_45 = arith.constant 1.000000e+00 : f32
    %260 = vector.broadcast %cst_45 : f32 to vector<2x128xf32>
    %261 = arith.addf %260, %259 : vector<2x128xf32>
    %262 = arith.divf %260, %261 : vector<2x128xf32>
    %263 = arith.mulf %254, %238 : vector<2x128xf32>
    %264 = arith.mulf %248, %256 : vector<2x128xf32>
    %265 = arith.addf %263, %264 : vector<2x128xf32>
    %266 = math.tanh %265 : vector<2x128xf32>
    %267 = arith.mulf %262, %266 : vector<2x128xf32>
    %268 = tpu.iota {dimensions = array<i32: 1>} : vector<2x128xi32>
    %c32_i32_46 = arith.constant 32 : i32
    %269 = vector.broadcast %c32_i32_46 : i32 to vector<2x128xi32>
    %270 = arith.cmpi slt, %268, %269 : vector<2x128xi32>
    %271 = arith.select %270, %78, %267 : vector<2x128xi1>, vector<2x128xf32>
    %272 = vector.extract_strided_slice %271 {offsets = [0, 0], sizes = [2, 64], strides = [1, 1]} : vector<2x128xf32> to vector<2x64xf32>
    %273 = arith.select %270, %105, %240 : vector<2x128xi1>, vector<2x128xf32>
    %274 = vector.extract_strided_slice %273 {offsets = [0, 0], sizes = [2, 64], strides = [1, 1]} : vector<2x128xf32> to vector<2x64xf32>
    %275 = arith.select %270, %132, %213 : vector<2x128xi1>, vector<2x128xf32>
    %276 = vector.extract_strided_slice %275 {offsets = [0, 0], sizes = [2, 64], strides = [1, 1]} : vector<2x128xf32> to vector<2x64xf32>
    %277 = arith.select %270, %159, %186 : vector<2x128xi1>, vector<2x128xf32>
    %278 = vector.extract_strided_slice %277 {offsets = [0, 0], sizes = [2, 64], strides = [1, 1]} : vector<2x128xf32> to vector<2x64xf32>
    %279 = arith.select %270, %186, %159 : vector<2x128xi1>, vector<2x128xf32>
    %280 = vector.extract_strided_slice %279 {offsets = [0, 0], sizes = [2, 64], strides = [1, 1]} : vector<2x128xf32> to vector<2x64xf32>
    %281 = arith.select %270, %213, %132 : vector<2x128xi1>, vector<2x128xf32>
    %282 = vector.extract_strided_slice %281 {offsets = [0, 0], sizes = [2, 64], strides = [1, 1]} : vector<2x128xf32> to vector<2x64xf32>
    %283 = arith.select %270, %240, %105 : vector<2x128xi1>, vector<2x128xf32>
    %284 = vector.extract_strided_slice %283 {offsets = [0, 0], sizes = [2, 64], strides = [1, 1]} : vector<2x128xf32> to vector<2x64xf32>
    %285 = arith.select %270, %267, %78 : vector<2x128xi1>, vector<2x128xf32>
    %286 = vector.extract_strided_slice %285 {offsets = [0, 0], sizes = [2, 64], strides = [1, 1]} : vector<2x128xf32> to vector<2x64xf32>
    %287 = vector.shape_cast %272 : vector<2x64xf32> to vector<1x2x64xf32>
    %288 = vector.shape_cast %274 : vector<2x64xf32> to vector<1x2x64xf32>
    %289 = vector.shape_cast %276 : vector<2x64xf32> to vector<1x2x64xf32>
    %290 = vector.shape_cast %278 : vector<2x64xf32> to vector<1x2x64xf32>
    %291 = vector.shape_cast %280 : vector<2x64xf32> to vector<1x2x64xf32>
    %292 = vector.shape_cast %282 : vector<2x64xf32> to vector<1x2x64xf32>
    %293 = vector.shape_cast %284 : vector<2x64xf32> to vector<1x2x64xf32>
    %294 = vector.shape_cast %286 : vector<2x64xf32> to vector<1x2x64xf32>
    %295 = tpu.concatenate %287, %288, %289, %290, %291, %292, %293, %294 in 0 : vector<1x2x64xf32>, vector<1x2x64xf32>, vector<1x2x64xf32>, vector<1x2x64xf32>, vector<1x2x64xf32>, vector<1x2x64xf32>, vector<1x2x64xf32>, vector<1x2x64xf32> -> vector<8x2x64xf32>
    %c0_47 = arith.constant 0 : index
    %c0_48 = arith.constant 0 : index
    %c0_49 = arith.constant 0 : index
    %296 = vector.load %arg7[%c0_47, %c0_48, %c0_49] : memref<8x2x64xf32, #tpu.memory_space<vmem>>, vector<8x2x64xf32>
    tpu.vector_store %arg7[%c0_47, %c0_48, %c0_49], %295 {strides = array<i32>} : memref<8x2x64xf32, #tpu.memory_space<vmem>>, vector<8x2x64xf32>,
    return
  }
  func.func @transform_0(%arg0: i32) -> (i32, i32) {
    %c0_i32 = arith.constant 0 : i32
    %c0_i32_0 = arith.constant 0 : i32
    %c0_i32_1 = arith.constant 0 : i32
    return %c0_i32, %c0_i32_0 : i32, i32
  }
  func.func @transform_1(%arg0: i32) -> (i32, i32) {
    %c0_i32 = arith.constant 0 : i32
    %c0_i32_0 = arith.constant 0 : i32
    %c0_i32_1 = arith.constant 0 : i32
    return %c0_i32, %c0_i32_0 : i32, i32
  }
  func.func @transform_2(%arg0: i32) -> (i32, i32) {
    %c0_i32 = arith.constant 0 : i32
    %c0_i32_0 = arith.constant 0 : i32
    %c0_i32_1 = arith.constant 0 : i32
    return %c0_i32, %c0_i32_0 : i32, i32
  }
  func.func @transform_3(%arg0: i32) -> (i32, i32) {
    %c0_i32 = arith.constant 0 : i32
    %c0_i32_0 = arith.constant 0 : i32
    %c0_i32_1 = arith.constant 0 : i32
    return %c0_i32, %c0_i32_0 : i32, i32
  }
  func.func @transform_4(%arg0: i32) -> (i32, i32) {
    %c0_i32 = arith.constant 0 : i32
    %c0_i32_0 = arith.constant 0 : i32
    %c0_i32_1 = arith.constant 0 : i32
    return %c0_i32, %c0_i32_0 : i32, i32
  }
  func.func @transform_5(%arg0: i32) -> (i32, i32) {
    %c0_i32 = arith.constant 0 : i32
    %c0_i32_0 = arith.constant 0 : i32
    %c0_i32_1 = arith.constant 0 : i32
    return %c0_i32, %c0_i32_0 : i32, i32
  }
  func.func @transform_6(%arg0: i32) -> (i32, i32, i32) {
    %c0_i32 = arith.constant 0 : i32
    %c0_i32_0 = arith.constant 0 : i32
    %c0_i32_1 = arith.constant 0 : i32
    %c0_i32_2 = arith.constant 0 : i32
    return %c0_i32, %c0_i32_0, %c0_i32_1 : i32, i32, i32
  }
}

</mosaic_0001>

<llo_original>
// kernel: rnn_encoder_forward.1
$region0: #{rnn_encoder_forward.1}
  #allocation0 [shape = 'u32[]', space=smem, size = 0x4, offset = 0x4, fixed_abs, tag = 'smem constant byte address 0x4 - core index']
  #allocation1 [shape = 'u32[72,128]{1,0:T(1,128)}', space=vmem, size = 0x9000, scoped, tag = 'internal scratch']
  %s0 = inlined_call_operand.hbm [shape: f32[16,32], index: 0, kind: input, shape index: {}]
  %s1 = inlined_call_operand.hbm [shape: f32[2,128], index: 1, kind: input, shape index: {}]
  %s2 = inlined_call_operand.hbm [shape: f32[2,128], index: 2, kind: input, shape index: {}]
  %s3 = inlined_call_operand.hbm [shape: f32[32,512], index: 3, kind: input, shape index: {}]
  %s4 = inlined_call_operand.hbm [shape: f32[128,512], index: 4, kind: input, shape index: {}]
  %s5 = inlined_call_operand.vmem [shape: f32[1,512], index: 5, kind: input, shape index: {}]
  %s6 = inlined_call_operand.hbm [shape: f32[8,2,64], index: 6, kind: output, shape index: {}]
  %s7 = sld [smem:[#allocation0]]
  $region54: #{rnn_encoder_forward.1} parent=0
    _
  %s9 = ssub.s32 1, %s7
  %s10 = scalar_select 0, %s9, %s7
  $region1: #{rnn_encoder_forward.1} parent=0
    #allocation2 [shape = 'u8[8192]{0}', space=vmem, size = 0x2000, scoped, tag = 'input window, operand 0, single buffered']
    #allocation3 [shape = 's32[1]{0}', space=sflag, size = 0x4, scoped, tag = 'scoped memory for rnn_encoder_forward.1']
    #allocation4 [shape = 's32[1]{0}', space=sflag, size = 0x4, scoped, tag = 'scoped memory for rnn_encoder_forward.1']
    #allocation5 [shape = 'u8[1024]{0}', space=vmem, size = 0x400, scoped, tag = 'input window, operand 1, single buffered']
    #allocation6 [shape = 's32[1]{0}', space=sflag, size = 0x4, scoped, tag = 'scoped memory for rnn_encoder_forward.1']
    #allocation7 [shape = 'u8[1024]{0}', space=vmem, size = 0x400, scoped, tag = 'input window, operand 2, single buffered']
    #allocation8 [shape = 'u8[65536]{0}', space=vmem, size = 0x10000, scoped, tag = 'input window, operand 3, single buffered']
    #allocation9 [shape = 's32[1]{0}', space=sflag, size = 0x4, scoped, tag = 'scoped memory for rnn_encoder_forward.1']
    #allocation10 [shape = 'u8[262144]{0}', space=vmem, size = 0x40000, scoped, tag = 'input window, operand 4, single buffered']
    #allocation11 [shape = 'u8[8192]{0}', space=vmem, size = 0x2000, scoped, tag = 'output window, operand 0, single buffered']
    %11 = vsyncpa [#allocation3], 0
    %12 = vsyncpa [#allocation6], 0
    %13 = vsyncpa [#allocation9], 0
    %14 = vsyncpa [#allocation4], 0
    // Predicated region
    $region2: #{rnn_encoder_forward.1} parent=1 // pred_check
      _
    $region3: #{rnn_encoder_forward.1} parent=1 // pred_check_branch
      %16 = sbr.rel (0) target = $region5
    $region4: #{rnn_encoder_forward.1} parent=1 // pred_region
      %18 = vsyncadd [#allocation3], 0
      %s19 = sshll.u32 %s0, 4
      %s20 = int_to_ptr.hbm [resolvable:$true] %s19
      %s21 = sshll.u32 [#allocation2], 4
      %s22 = int_to_ptr.vmem [resolvable:$true] %s21
      %27 = dma.hbm_to_vmem [thread:$0]  %s20, 256, %s22, [#allocation3], 128, 128, 8
    $region5: #{rnn_encoder_forward.1} parent=1 // pred_fallthru
      _
    // Predicated region
    $region6: #{rnn_encoder_forward.1} parent=1 // pred_check
      _
    $region7: #{rnn_encoder_forward.1} parent=1 // pred_check_branch
      %29 = sbr.rel (0) target = $region9
    $region8: #{rnn_encoder_forward.1} parent=1 // pred_region
      %31 = vsyncadd [#allocation6], 0
      %s33 = sshll.u32 %s1, 4
      %s34 = int_to_ptr.hbm [resolvable:$true] %s33
      %s35 = sshll.u32 [#allocation5], 4
      %s36 = int_to_ptr.vmem [resolvable:$true] %s35
      %38 = dma.hbm_to_vmem [thread:$0]  %s34, 32, %s36, [#allocation6]
    $region9: #{rnn_encoder_forward.1} parent=1 // pred_fallthru
      _
    // Predicated region
    $region10: #{rnn_encoder_forward.1} parent=1 // pred_check
      _
    $region11: #{rnn_encoder_forward.1} parent=1 // pred_check_branch
      %40 = sbr.rel (0) target = $region13
    $region12: #{rnn_encoder_forward.1} parent=1 // pred_region
      %42 = vsyncadd [#allocation6], 0
      %s44 = sshll.u32 %s2, 4
      %s45 = int_to_ptr.hbm [resolvable:$true] %s44
      %s46 = sshll.u32 [#allocation7], 4
      %s47 = int_to_ptr.vmem [resolvable:$true] %s46
      %49 = dma.hbm_to_vmem [thread:$0]  %s45, 32, %s47, [#allocation6]
    $region13: #{rnn_encoder_forward.1} parent=1 // pred_fallthru
      _
    // Predicated region
    $region14: #{rnn_encoder_forward.1} parent=1 // pred_check
      _
    $region15: #{rnn_encoder_forward.1} parent=1 // pred_check_branch
      %51 = sbr.rel (0) target = $region17
    $region16: #{rnn_encoder_forward.1} parent=1 // pred_region
      %53 = vsyncadd [#allocation9], 0
      %s54 = sshll.u32 %s3, 4
      %s55 = int_to_ptr.hbm [resolvable:$true] %s54
      %s56 = sshll.u32 [#allocation8], 4
      %s57 = int_to_ptr.vmem [resolvable:$true] %s56
      %62 = dma.hbm_to_vmem [thread:$0]  %s55, 2048, %s57, [#allocation9], 512, 512, 32
    $region17: #{rnn_encoder_forward.1} parent=1 // pred_fallthru
      _
    // Predicated region
    $region18: #{rnn_encoder_forward.1} parent=1 // pred_check
      _
    $region19: #{rnn_encoder_forward.1} parent=1 // pred_check_branch
      %64 = sbr.rel (0) target = $region21
    $region20: #{rnn_encoder_forward.1} parent=1 // pred_region
      %66 = vsyncadd [#allocation9], 0
      %s67 = sshll.u32 %s4, 4
      %s68 = int_to_ptr.hbm [resolvable:$true] %s67
      %s69 = sshll.u32 [#allocation10], 4
      %s70 = int_to_ptr.vmem [resolvable:$true] %s69
      %75 = dma.hbm_to_vmem [thread:$0]  %s68, 8192, %s70, [#allocation9], 512, 512, 32
    $region21: #{rnn_encoder_forward.1} parent=1 // pred_fallthru
      _
    // Predicated region
    $region22: #{rnn_encoder_forward.1} parent=1 // pred_check
      _
    $region23: #{rnn_encoder_forward.1} parent=1 // pred_check_branch
      %77 = sbr.rel (0) target = $region25
    $region24: #{rnn_encoder_forward.1} parent=1 // pred_region
      _
    $region25: #{rnn_encoder_forward.1} parent=1 // pred_fallthru
      _
    // Predicated region
    $region26: #{rnn_encoder_forward.1} parent=1 // pred_check
      _
    $region27: #{rnn_encoder_forward.1} parent=1 // pred_check_branch
      %79 = sbr.rel (0) target = $region29
    $region28: #{rnn_encoder_forward.1} parent=1 // pred_region
      %81 = dma.done [#allocation3], 256
    $region29: #{rnn_encoder_forward.1} parent=1 // pred_fallthru
      _
    // Predicated region
    $region30: #{rnn_encoder_forward.1} parent=1 // pred_check
      _
    $region31: #{rnn_encoder_forward.1} parent=1 // pred_check_branch
      %83 = sbr.rel (0) target = $region33
    $region32: #{rnn_encoder_forward.1} parent=1 // pred_region
      %85 = dma.done [#allocation6], 32
    $region33: #{rnn_encoder_forward.1} parent=1 // pred_fallthru
      _
    // Predicated region
    $region34: #{rnn_encoder_forward.1} parent=1 // pred_check
      _
    $region35: #{rnn_encoder_forward.1} parent=1 // pred_check_branch
      %87 = sbr.rel (0) target = $region37
    $region36: #{rnn_encoder_forward.1} parent=1 // pred_region
      %89 = dma.done [#allocation6], 32
    $region37: #{rnn_encoder_forward.1} parent=1 // pred_fallthru
      _
    // Predicated region
    $region38: #{rnn_encoder_forward.1} parent=1 // pred_check
      _
    $region39: #{rnn_encoder_forward.1} parent=1 // pred_check_branch
      %91 = sbr.rel (0) target = $region41
    $region40: #{rnn_encoder_forward.1} parent=1 // pred_region
      %93 = dma.done [#allocation9], 2048
    $region41: #{rnn_encoder_forward.1} parent=1 // pred_fallthru
      _
    // Predicated region
    $region42: #{rnn_encoder_forward.1} parent=1 // pred_check
      _
    $region43: #{rnn_encoder_forward.1} parent=1 // pred_check_branch
      %95 = sbr.rel (0) target = $region45
    $region44: #{rnn_encoder_forward.1} parent=1 // pred_region
      %97 = dma.done [#allocation9], 8192
    $region45: #{rnn_encoder_forward.1} parent=1 // pred_fallthru
      _
    %v98 = vld [vmem:[#allocation2] sm:$0xff]
    %v99 = vld [vmem:[#allocation2 + $0x8] sm:$0xff]
    %v100 = vld [vmem:[#allocation8] sm:$0xff]
    %v101 = vld [vmem:[#allocation8 + $0x8] sm:$0xff]
    %v102 = vld [vmem:[#allocation8 + $0x10] sm:$0xff]
    %v103 = vld [vmem:[#allocation8 + $0x18] sm:$0xff]
    %v104 = vld [vmem:[#allocation8 + $0x20] sm:$0xff]
    %v105 = vld [vmem:[#allocation8 + $0x28] sm:$0xff]
    %v106 = vld [vmem:[#allocation8 + $0x30] sm:$0xff]
    %v107 = vld [vmem:[#allocation8 + $0x38] sm:$0xff]
    %v108 = vld [vmem:[#allocation8 + $0x40] sm:$0xff]
    %v109 = vld [vmem:[#allocation8 + $0x48] sm:$0xff]
    %v110 = vld [vmem:[#allocation8 + $0x50] sm:$0xff]
    %v111 = vld [vmem:[#allocation8 + $0x58] sm:$0xff]
    %v112 = vld [vmem:[#allocation8 + $0x60] sm:$0xff]
    %v113 = vld [vmem:[#allocation8 + $0x68] sm:$0xff]
    %v114 = vld [vmem:[#allocation8 + $0x70] sm:$0xff]
    %v115 = vld [vmem:[#allocation8 + $0x78] sm:$0xff]
    %v116 = vld [vmem:[%s5] sm:$0xf]
    %v118 = vperm.slane %v116, 0
    %v119 = vperm.slane %v116, 1
    %v120 = vperm.slane %v116, 2
    %v121 = vperm.slane %v116, 3
    %vm126 = vcmask 261120
    %v128 = vsel %vm126, %v98, 0
    %v131 = vsel %vm126, %v99, 0
    %133 = vmatpush.msra.mxu0 0.0
    %134 = vmatpush.msra.mxu0 0.0
    %135 = vmatpush.msra.mxu0 0.0
    %136 = vmatpush.msra.mxu0 0.0
    %137 = vmatpush.msra.mxu0 0.0
    %138 = vmatpush.msra.mxu0 0.0
    %139 = vmatpush.msra.mxu0 0.0
    %140 = vmatpush.msra.mxu0 0.0
    %141 = vmatpush.msra.mxu0 0.0
    %142 = vmatpush.msra.mxu0 0.0
    %143 = vmatpush.msra.mxu0 0.0
    %144 = vmatpush.msra.mxu0 0.0
    %145 = vmatpush.msra.mxu0 %v112
    %146 = vmatpush.msra.mxu0 %v108
    %147 = vmatpush.msra.mxu0 %v104
    %148 = vmatpush.msra.mxu0 %v100
    %149 = vmatmul.f32.gmra.mxu0 %v128
    %v150 = vpop.f32.mrf.mxu0
    %v151 = vadd.f32 %v118, %v150
    %152 = vmatmul.f32.gmra.mxu0 %v131
    %v153 = vpop.f32.mrf.mxu0
    %v154 = vadd.f32 %v118, %v153
    %155 = vdwg.mxu0
    %156 = vmatpush.msra.mxu0 0.0
    %157 = vmatpush.msra.mxu0 0.0
    %158 = vmatpush.msra.mxu0 0.0
    %159 = vmatpush.msra.mxu0 0.0
    %160 = vmatpush.msra.mxu0 0.0
    %161 = vmatpush.msra.mxu0 0.0
    %162 = vmatpush.msra.mxu0 0.0
    %163 = vmatpush.msra.mxu0 0.0
    %164 = vmatpush.msra.mxu0 0.0
    %165 = vmatpush.msra.mxu0 0.0
    %166 = vmatpush.msra.mxu0 0.0
    %167 = vmatpush.msra.mxu0 0.0
    %168 = vmatpush.msra.mxu0 %v113
    %169 = vmatpush.msra.mxu0 %v109
    %170 = vmatpush.msra.mxu0 %v105
    %171 = vmatpush.msra.mxu0 %v101
    %172 = vmatmul.f32.gmra.mxu0 %v128
    %v173 = vpop.f32.mrf.mxu0
    %v174 = vadd.f32 %v119, %v173
    %175 = vmatmul.f32.gmra.mxu0 %v131
    %v176 = vpop.f32.mrf.mxu0
    %v177 = vadd.f32 %v119, %v176
    %178 = vdwg.mxu0
    %179 = vmatpush.msra.mxu0 0.0
    %180 = vmatpush.msra.mxu0 0.0
    %181 = vmatpush.msra.mxu0 0.0
    %182 = vmatpush.msra.mxu0 0.0
    %183 = vmatpush.msra.mxu0 0.0
    %184 = vmatpush.msra.mxu0 0.0
    %185 = vmatpush.msra.mxu0 0.0
    %186 = vmatpush.msra.mxu0 0.0
    %187 = vmatpush.msra.mxu0 0.0
    %188 = vmatpush.msra.mxu0 0.0
    %189 = vmatpush.msra.mxu0 0.0
    %190 = vmatpush.msra.mxu0 0.0
    %191 = vmatpush.msra.mxu0 %v114
    %192 = vmatpush.msra.mxu0 %v110
    %193 = vmatpush.msra.mxu0 %v106
    %194 = vmatpush.msra.mxu0 %v102
    %195 = vmatmul.f32.gmra.mxu0 %v128
    %v196 = vpop.f32.mrf.mxu0
    %v197 = vadd.f32 %v120, %v196
    %198 = vmatmul.f32.gmra.mxu0 %v131
    %v199 = vpop.f32.mrf.mxu0
    %v200 = vadd.f32 %v120, %v199
    %201 = vdwg.mxu0
    %202 = vmatpush.msra.mxu0 0.0
    %203 = vmatpush.msra.mxu0 0.0
    %204 = vmatpush.msra.mxu0 0.0
    %205 = vmatpush.msra.mxu0 0.0
    %206 = vmatpush.msra.mxu0 0.0
    %207 = vmatpush.msra.mxu0 0.0
    %208 = vmatpush.msra.mxu0 0.0
    %209 = vmatpush.msra.mxu0 0.0
    %210 = vmatpush.msra.mxu0 0.0
    %211 = vmatpush.msra.mxu0 0.0
    %212 = vmatpush.msra.mxu0 0.0
    %213 = vmatpush.msra.mxu0 0.0
    %214 = vmatpush.msra.mxu0 %v115
    %215 = vmatpush.msra.mxu0 %v111
    %216 = vmatpush.msra.mxu0 %v107
    %217 = vmatpush.msra.mxu0 %v103
    %218 = vmatmul.f32.gmra.mxu0 %v128
    %v219 = vpop.f32.mrf.mxu0
    %v220 = vadd.f32 %v121, %v219
    %221 = vmatmul.f32.gmra.mxu0 %v131
    %v222 = vpop.f32.mrf.mxu0
    %v223 = vadd.f32 %v121, %v222
    %224 = vdwg.mxu0
    %v225 = vlaneseq
    %v226 = vand.u32 %v225, 127
    %v227 = vadd.s32 %v226, 128
    %v228 = vadd.s32 %v226, 256
    %v229 = vadd.s32 %v226, 384
    %vm230 = vcmp.lt.s32.totalorder %v226, 0
    %v231 = vsub.s32 0, %v226
    %v232 = vsel %vm230, %v231, %v226
    %v233 = vshrl.u32 %v232, 7
    %v234 = vand.u32 %v232, 127
    %v235 = vsub.s32 0, %v234
    %v236 = vsel %vm230, %v235, %v234
    %vm237 = vcmp.lt.s32.totalorder %v227, 0
    %v238 = vsub.s32 0, %v227
    %v239 = vsel %vm237, %v238, %v227
    %v240 = vshrl.u32 %v239, 7
    %v241 = vand.u32 %v239, 127
    %v242 = vsub.s32 0, %v241
    %v243 = vsel %vm237, %v242, %v241
    %vm244 = vcmp.lt.s32.totalorder %v228, 0
    %v245 = vsub.s32 0, %v228
    %v246 = vsel %vm244, %v245, %v228
    %v247 = vshrl.u32 %v246, 7
    %v248 = vand.u32 %v246, 127
    %v249 = vsub.s32 0, %v248
    %v250 = vsel %vm244, %v249, %v248
    %vm251 = vcmp.lt.s32.totalorder %v229, 0
    %v252 = vsub.s32 0, %v229
    %v253 = vsel %vm251, %v252, %v229
    %v254 = vshrl.u32 %v253, 7
    %v255 = vand.u32 %v253, 127
    %v256 = vsub.s32 0, %v255
    %v257 = vsel %vm251, %v256, %v255
    %vm258 = vcmp.ne.s32.totalorder %v236, 0
    %vm259 = vcmp.ne.s32.totalorder %v243, 0
    %vm260 = vcmp.ne.s32.totalorder %v250, 0
    %vm261 = vcmp.ne.s32.totalorder %v257, 0
    %vm262 = vcmp.lt.s32.totalorder %v236, 0
    %vm263 = vcmp.lt.s32.totalorder %v243, 0
    %vm264 = vcmp.lt.s32.totalorder %v250, 0
    %vm265 = vcmp.lt.s32.totalorder %v257, 0
    %vm266 = vmand %vm262, %vm258
    %vm267 = vmand %vm263, %vm259
    %vm268 = vmand %vm264, %vm260
    %vm269 = vmand %vm265, %vm261
    %v270 = vadd.s32 %v236, 128
    %v271 = vadd.s32 %v243, 128
    %v272 = vadd.s32 %v250, 128
    %v273 = vadd.s32 %v257, 128
    %v274 = vsel %vm266, %v270, %v236
    %v275 = vsel %vm267, %v271, %v243
    %v276 = vsel %vm268, %v272, %v250
    %v277 = vsel %vm269, %v273, %v257
    %vm278 = vcmp.lt.s32.totalorder %v274, 32
    %vm279 = vcmp.lt.s32.totalorder %v275, 32
    %vm280 = vcmp.lt.s32.totalorder %v276, 32
    %vm281 = vcmp.lt.s32.totalorder %v277, 32
    %v286 = vrot.slane %v154, 6
    %v287 = vrot.slane %v177, 6
    %v288 = vrot.slane %v200, 6
    %v289 = vrot.slane %v223, 6
    %v294 = vsel %vm278, %v151, %v286
    %v295 = vsel %vm279, %v174, %v287
    %v296 = vsel %vm280, %v197, %v288
    %v297 = vsel %vm281, %v220, %v289
    %v298 = vrot.slane %v154, 2
    %v299 = vrot.slane %v177, 2
    %v300 = vrot.slane %v200, 2
    %v301 = vrot.slane %v223, 2
    %v306 = vsel %vm278, %v151, %v298
    %v307 = vsel %vm279, %v174, %v299
    %v308 = vsel %vm280, %v197, %v300
    %v309 = vsel %vm281, %v220, %v301
    %v314 = vrot.slane %v151, 6
    %v315 = vrot.slane %v174, 6
    %v316 = vrot.slane %v197, 6
    %v317 = vrot.slane %v220, 6
    %v322 = vsel %vm278, %v154, %v314
    %v323 = vsel %vm279, %v177, %v315
    %v324 = vsel %vm280, %v200, %v316
    %v325 = vsel %vm281, %v223, %v317
    %v326 = vrot.slane %v151, 2
    %v327 = vrot.slane %v174, 2
    %v328 = vrot.slane %v197, 2
    %v329 = vrot.slane %v220, 2
    %v334 = vsel %vm278, %v154, %v326
    %v335 = vsel %vm279, %v177, %v327
    %v336 = vsel %vm280, %v200, %v328
    %v337 = vsel %vm281, %v223, %v329
    %v338 = vld [vmem:[#allocation10] sm:$0xff]
    %v339 = vld [vmem:[#allocation10 + $0x8] sm:$0xff]
    %v340 = vld [vmem:[#allocation10 + $0x10] sm:$0xff]
    %v341 = vld [vmem:[#allocation10 + $0x18] sm:$0xff]
    %v342 = vld [vmem:[#allocation10 + $0x20] sm:$0xff]
    %v343 = vld [vmem:[#allocation10 + $0x28] sm:$0xff]
    %v344 = vld [vmem:[#allocation10 + $0x30] sm:$0xff]
    %v345 = vld [vmem:[#allocation10 + $0x38] sm:$0xff]
    %v346 = vld [vmem:[#allocation10 + $0x40] sm:$0xff]
    %v347 = vld [vmem:[#allocation10 + $0x48] sm:$0xff]
    %v348 = vld [vmem:[#allocation10 + $0x50] sm:$0xff]
    %v349 = vld [vmem:[#allocation10 + $0x58] sm:$0xff]
    %v350 = vld [vmem:[#allocation10 + $0x60] sm:$0xff]
    %v351 = vld [vmem:[#allocation10 + $0x68] sm:$0xff]
    %v352 = vld [vmem:[#allocation10 + $0x70] sm:$0xff]
    %v353 = vld [vmem:[#allocation10 + $0x78] sm:$0xff]
    %v354 = vld [vmem:[#allocation10 + $0x80] sm:$0xff]
    %v355 = vld [vmem:[#allocation10 + $0x88] sm:$0xff]
    %v356 = vld [vmem:[#allocation10 + $0x90] sm:$0xff]
    %v357 = vld [vmem:[#allocation10 + $0x98] sm:$0xff]
    %v358 = vld [vmem:[#allocation10 + $0xa0] sm:$0xff]
    %v359 = vld [vmem:[#allocation10 + $0xa8] sm:$0xff]
    %v360 = vld [vmem:[#allocation10 + $0xb0] sm:$0xff]
    %v361 = vld [vmem:[#allocation10 + $0xb8] sm:$0xff]
    %v362 = vld [vmem:[#allocation10 + $0xc0] sm:$0xff]
    %v363 = vld [vmem:[#allocation10 + $0xc8] sm:$0xff]
    %v364 = vld [vmem:[#allocation10 + $0xd0] sm:$0xff]
    %v365 = vld [vmem:[#allocation10 + $0xd8] sm:$0xff]
    %v366 = vld [vmem:[#allocation10 + $0xe0] sm:$0xff]
    %v367 = vld [vmem:[#allocation10 + $0xe8] sm:$0xff]
    %v368 = vld [vmem:[#allocation10 + $0xf0] sm:$0xff]
    %v369 = vld [vmem:[#allocation10 + $0xf8] sm:$0xff]
    %v370 = vld [vmem:[#allocation10 + $0x100] sm:$0xff]
    %v371 = vld [vmem:[#allocation10 + $0x108] sm:$0xff]
    %v372 = vld [vmem:[#allocation10 + $0x110] sm:$0xff]
    %v373 = vld [vmem:[#allocation10 + $0x118] sm:$0xff]
    %v374 = vld [vmem:[#allocation10 + $0x120] sm:$0xff]
    %v375 = vld [vmem:[#allocation10 + $0x128] sm:$0xff]
    %v376 = vld [vmem:[#allocation10 + $0x130] sm:$0xff]
    %v377 = vld [vmem:[#allocation10 + $0x138] sm:$0xff]
    %v378 = vld [vmem:[#allocation10 + $0x140] sm:$0xff]
    %v379 = vld [vmem:[#allocation10 + $0x148] sm:$0xff]
    %v380 = vld [vmem:[#allocation10 + $0x150] sm:$0xff]
    %v381 = vld [vmem:[#allocation10 + $0x158] sm:$0xff]
    %v382 = vld [vmem:[#allocation10 + $0x160] sm:$0xff]
    %v383 = vld [vmem:[#allocation10 + $0x168] sm:$0xff]
    %v384 = vld [vmem:[#allocation10 + $0x170] sm:$0xff]
    %v385 = vld [vmem:[#allocation10 + $0x178] sm:$0xff]
    %v386 = vld [vmem:[#allocation10 + $0x180] sm:$0xff]
    %v387 = vld [vmem:[#allocation10 + $0x188] sm:$0xff]
    %v388 = vld [vmem:[#allocation10 + $0x190] sm:$0xff]
    %v389 = vld [vmem:[#allocation10 + $0x198] sm:$0xff]
    %v390 = vld [vmem:[#allocation10 + $0x1a0] sm:$0xff]
    %v391 = vld [vmem:[#allocation10 + $0x1a8] sm:$0xff]
    %v392 = vld [vmem:[#allocation10 + $0x1b0] sm:$0xff]
    %v393 = vld [vmem:[#allocation10 + $0x1b8] sm:$0xff]
    %v394 = vld [vmem:[#allocation10 + $0x1c0] sm:$0xff]
    %v395 = vld [vmem:[#allocation10 + $0x1c8] sm:$0xff]
    %v396 = vld [vmem:[#allocation10 + $0x1d0] sm:$0xff]
    %v397 = vld [vmem:[#allocation10 + $0x1d8] sm:$0xff]
    %v398 = vld [vmem:[#allocation10 + $0x1e0] sm:$0xff]
    %v399 = vld [vmem:[#allocation10 + $0x1e8] sm:$0xff]
    %v400 = vld [vmem:[#allocation10 + $0x1f0] sm:$0xff]
    %v401 = vld [vmem:[#allocation10 + $0x1f8] sm:$0xff]
    %v402 = vld [vmem:[#allocation5] sm:$0x3]
    %v403 = vld [vmem:[#allocation7] sm:$0x3]
    %404 = vmatpush.msra.mxu0 %v398
    %405 = vmatpush.msra.mxu0 %v394
    %406 = vmatpush.msra.mxu0 %v390
    %407 = vmatpush.msra.mxu0 %v386
    %408 = vmatpush.msra.mxu0 %v382
    %409 = vmatpush.msra.mxu0 %v378
    %410 = vmatpush.msra.mxu0 %v374
    %411 = vmatpush.msra.mxu0 %v370
    %412 = vmatpush.msra.mxu0 %v366
    %413 = vmatpush.msra.mxu0 %v362
    %414 = vmatpush.msra.mxu0 %v358
    %415 = vmatpush.msra.mxu0 %v354
    %416 = vmatpush.msra.mxu0 %v350
    %417 = vmatpush.msra.mxu0 %v346
    %418 = vmatpush.msra.mxu0 %v342
    %419 = vmatpush.msra.mxu0 %v338
    %420 = vmatmul.f32.gmra.mxu0 %v402
    %v421 = vpop.f32.mrf.mxu0
    %v422 = vadd.f32 0.0, %v421
    %423 = vdwg.mxu0
    %424 = vmatpush.msra.mxu0 %v399
    %425 = vmatpush.msra.mxu0 %v395
    %426 = vmatpush.msra.mxu0 %v391
    %427 = vmatpush.msra.mxu0 %v387
    %428 = vmatpush.msra.mxu0 %v383
    %429 = vmatpush.msra.mxu0 %v379
    %430 = vmatpush.msra.mxu0 %v375
    %431 = vmatpush.msra.mxu0 %v371
    %432 = vmatpush.msra.mxu0 %v367
    %433 = vmatpush.msra.mxu0 %v363
    %434 = vmatpush.msra.mxu0 %v359
    %435 = vmatpush.msra.mxu0 %v355
    %436 = vmatpush.msra.mxu0 %v351
    %437 = vmatpush.msra.mxu0 %v347
    %438 = vmatpush.msra.mxu0 %v343
    %439 = vmatpush.msra.mxu0 %v339
    %440 = vmatmul.f32.gmra.mxu0 %v402
    %v441 = vpop.f32.mrf.mxu0
    %v442 = vadd.f32 0.0, %v441
    %443 = vdwg.mxu0
    %444 = vmatpush.msra.mxu0 %v400
    %445 = vmatpush.msra.mxu0 %v396
    %446 = vmatpush.msra.mxu0 %v392
    %447 = vmatpush.msra.mxu0 %v388
    %448 = vmatpush.msra.mxu0 %v384
    %449 = vmatpush.msra.mxu0 %v380
    %450 = vmatpush.msra.mxu0 %v376
    %451 = vmatpush.msra.mxu0 %v372
    %452 = vmatpush.msra.mxu0 %v368
    %453 = vmatpush.msra.mxu0 %v364
    %454 = vmatpush.msra.mxu0 %v360
    %455 = vmatpush.msra.mxu0 %v356
    %456 = vmatpush.msra.mxu0 %v352
    %457 = vmatpush.msra.mxu0 %v348
    %458 = vmatpush.msra.mxu0 %v344
    %459 = vmatpush.msra.mxu0 %v340
    %460 = vmatmul.f32.gmra.mxu0 %v402
    %v461 = vpop.f32.mrf.mxu0
    %v462 = vadd.f32 0.0, %v461
    %463 = vdwg.mxu0
    %464 = vmatpush.msra.mxu0 %v401
    %465 = vmatpush.msra.mxu0 %v397
    %466 = vmatpush.msra.mxu0 %v393
    %467 = vmatpush.msra.mxu0 %v389
    %468 = vmatpush.msra.mxu0 %v385
    %469 = vmatpush.msra.mxu0 %v381
    %470 = vmatpush.msra.mxu0 %v377
    %471 = vmatpush.msra.mxu0 %v373
    %472 = vmatpush.msra.mxu0 %v369
    %473 = vmatpush.msra.mxu0 %v365
    %474 = vmatpush.msra.mxu0 %v361
    %475 = vmatpush.msra.mxu0 %v357
    %476 = vmatpush.msra.mxu0 %v353
    %477 = vmatpush.msra.mxu0 %v349
    %478 = vmatpush.msra.mxu0 %v345
    %479 = vmatpush.msra.mxu0 %v341
    %480 = vmatmul.f32.gmra.mxu0 %v402
    %v481 = vpop.f32.mrf.mxu0
    %v482 = vadd.f32 0.0, %v481
    %483 = vdwg.mxu0
    %v484 = vadd.f32 %v294, %v422
    %v485 = vadd.f32 %v295, %v442
    %v486 = vadd.f32 %v296, %v462
    %v487 = vadd.f32 %v297, %v482
    %v488 = vxor.u32 %v484, 2147483648
    %v489 = vmul.f32 %v488, 1.442695
    %v490 = vpow.pop %v489
    %v491 = vadd.f32 %v490, 1.0
    %v492 = vrcp.pop %v491
    %v493 = vmul.f32 %v491, %v492
    %v494 = vsub.f32 1.0, %v493
    %v495 = vmul.f32 %v492, %v494
    %v496 = vadd.f32 %v492, %v495
    %vm497 = vweird.f32 %v491
    %vm498 = vweird.f32 %v492
    %vm499 = vmor %vm497, %vm498
    %v500 = vsel %vm499, %v492, %v496
    %v501 = vand.u32 2147483647, %v491
    %vm502 = vcmp.eq.f32.partialorder %v501, 8.507059e+37
    %v503 = vand.u32 %v491, 2147483648
    %v504 = vor.u32 1.1754944e-38, %v503
    %v505 = vsel %vm502, %v504, %v500
    %v506 = vmul.f32 1.0, %v505
    %v507 = vxor.u32 %v485, 2147483648
    %v508 = vmul.f32 %v507, 1.442695
    %v509 = vpow.pop %v508
    %v510 = vadd.f32 %v509, 1.0
    %v511 = vrcp.pop %v510
    %v512 = vmul.f32 %v510, %v511
    %v513 = vsub.f32 1.0, %v512
    %v514 = vmul.f32 %v511, %v513
    %v515 = vadd.f32 %v511, %v514
    %vm516 = vweird.f32 %v510
    %vm517 = vweird.f32 %v511
    %vm518 = vmor %vm516, %vm517
    %v519 = vsel %vm518, %v511, %v515
    %v520 = vand.u32 2147483647, %v510
    %vm521 = vcmp.eq.f32.partialorder %v520, 8.507059e+37
    %v522 = vand.u32 %v510, 2147483648
    %v523 = vor.u32 1.1754944e-38, %v522
    %v524 = vsel %vm521, %v523, %v519
    %v525 = vmul.f32 1.0, %v524
    %v526 = vtanh.pop %v486
    %v527 = vxor.u32 %v487, 2147483648
    %v528 = vmul.f32 %v527, 1.442695
    %v529 = vpow.pop %v528
    %v530 = vadd.f32 %v529, 1.0
    %v531 = vrcp.pop %v530
    %v532 = vmul.f32 %v530, %v531
    %v533 = vsub.f32 1.0, %v532
    %v534 = vmul.f32 %v531, %v533
    %v535 = vadd.f32 %v531, %v534
    %vm536 = vweird.f32 %v530
    %vm537 = vweird.f32 %v531
    %vm538 = vmor %vm536, %vm537
    %v539 = vsel %vm538, %v531, %v535
    %v540 = vand.u32 2147483647, %v530
    %vm541 = vcmp.eq.f32.partialorder %v540, 8.507059e+37
    %v542 = vand.u32 %v530, 2147483648
    %v543 = vor.u32 1.1754944e-38, %v542
    %v544 = vsel %vm541, %v543, %v539
    %v545 = vmul.f32 1.0, %v544
    %v546 = vmul.f32 %v525, %v403
    %v547 = vmul.f32 %v506, %v526
    %v548 = vadd.f32 %v546, %v547
    %v549 = vtanh.pop %v548
    %v550 = vmul.f32 %v545, %v549
    %551 = vmatpush.msra.mxu0 %v398
    %552 = vmatpush.msra.mxu0 %v394
    %553 = vmatpush.msra.mxu0 %v390
    %554 = vmatpush.msra.mxu0 %v386
    %555 = vmatpush.msra.mxu0 %v382
    %556 = vmatpush.msra.mxu0 %v378
    %557 = vmatpush.msra.mxu0 %v374
    %558 = vmatpush.msra.mxu0 %v370
    %559 = vmatpush.msra.mxu0 %v366
    %560 = vmatpush.msra.mxu0 %v362
    %561 = vmatpush.msra.mxu0 %v358
    %562 = vmatpush.msra.mxu0 %v354
    %563 = vmatpush.msra.mxu0 %v350
    %564 = vmatpush.msra.mxu0 %v346
    %565 = vmatpush.msra.mxu0 %v342
    %566 = vmatpush.msra.mxu0 %v338
    %567 = vmatmul.f32.gmra.mxu0 %v550
    %v568 = vpop.f32.mrf.mxu0
    %v569 = vadd.f32 0.0, %v568
    %570 = vdwg.mxu0
    %571 = vmatpush.msra.mxu0 %v399
    %572 = vmatpush.msra.mxu0 %v395
    %573 = vmatpush.msra.mxu0 %v391
    %574 = vmatpush.msra.mxu0 %v387
    %575 = vmatpush.msra.mxu0 %v383
    %576 = vmatpush.msra.mxu0 %v379
    %577 = vmatpush.msra.mxu0 %v375
    %578 = vmatpush.msra.mxu0 %v371
    %579 = vmatpush.msra.mxu0 %v367
    %580 = vmatpush.msra.mxu0 %v363
    %581 = vmatpush.msra.mxu0 %v359
    %582 = vmatpush.msra.mxu0 %v355
    %583 = vmatpush.msra.mxu0 %v351
    %584 = vmatpush.msra.mxu0 %v347
    %585 = vmatpush.msra.mxu0 %v343
    %586 = vmatpush.msra.mxu0 %v339
    %587 = vmatmul.f32.gmra.mxu0 %v550
    %v588 = vpop.f32.mrf.mxu0
    %v589 = vadd.f32 0.0, %v588
    %590 = vdwg.mxu0
    %591 = vmatpush.msra.mxu0 %v400
    %592 = vmatpush.msra.mxu0 %v396
    %593 = vmatpush.msra.mxu0 %v392
    %594 = vmatpush.msra.mxu0 %v388
    %595 = vmatpush.msra.mxu0 %v384
    %596 = vmatpush.msra.mxu0 %v380
    %597 = vmatpush.msra.mxu0 %v376
    %598 = vmatpush.msra.mxu0 %v372
    %599 = vmatpush.msra.mxu0 %v368
    %600 = vmatpush.msra.mxu0 %v364
    %601 = vmatpush.msra.mxu0 %v360
    %602 = vmatpush.msra.mxu0 %v356
    %603 = vmatpush.msra.mxu0 %v352
    %604 = vmatpush.msra.mxu0 %v348
    %605 = vmatpush.msra.mxu0 %v344
    %606 = vmatpush.msra.mxu0 %v340
    %607 = vmatmul.f32.gmra.mxu0 %v550
    %v608 = vpop.f32.mrf.mxu0
    %v609 = vadd.f32 0.0, %v608
    %610 = vdwg.mxu0
    %611 = vmatpush.msra.mxu0 %v401
    %612 = vmatpush.msra.mxu0 %v397
    %613 = vmatpush.msra.mxu0 %v393
    %614 = vmatpush.msra.mxu0 %v389
    %615 = vmatpush.msra.mxu0 %v385
    %616 = vmatpush.msra.mxu0 %v381
    %617 = vmatpush.msra.mxu0 %v377
    %618 = vmatpush.msra.mxu0 %v373
    %619 = vmatpush.msra.mxu0 %v369
    %620 = vmatpush.msra.mxu0 %v365
    %621 = vmatpush.msra.mxu0 %v361
    %622 = vmatpush.msra.mxu0 %v357
    %623 = vmatpush.msra.mxu0 %v353
    %624 = vmatpush.msra.mxu0 %v349
    %625 = vmatpush.msra.mxu0 %v345
    %626 = vmatpush.msra.mxu0 %v341
    %627 = vmatmul.f32.gmra.mxu0 %v550
    %v628 = vpop.f32.mrf.mxu0
    %v629 = vadd.f32 0.0, %v628
    %630 = vdwg.mxu0
    %v635 = vrot.slane %v569, 6
    %v636 = vrot.slane %v589, 6
    %v637 = vrot.slane %v609, 6
    %v638 = vrot.slane %v629, 6
    %v643 = vadd.f32 %v306, %v635
    %v644 = vadd.f32 %v307, %v636
    %v645 = vadd.f32 %v308, %v637
    %v646 = vadd.f32 %v309, %v638
    %v647 = vxor.u32 %v643, 2147483648
    %v648 = vmul.f32 %v647, 1.442695
    %v649 = vpow.pop %v648
    %v650 = vadd.f32 %v649, 1.0
    %v651 = vrcp.pop %v650
    %v652 = vmul.f32 %v650, %v651
    %v653 = vsub.f32 1.0, %v652
    %v654 = vmul.f32 %v651, %v653
    %v655 = vadd.f32 %v651, %v654
    %vm656 = vweird.f32 %v650
    %vm657 = vweird.f32 %v651
    %vm658 = vmor %vm656, %vm657
    %v659 = vsel %vm658, %v651, %v655
    %v660 = vand.u32 2147483647, %v650
    %vm661 = vcmp.eq.f32.partialorder %v660, 8.507059e+37
    %v662 = vand.u32 %v650, 2147483648
    %v663 = vor.u32 1.1754944e-38, %v662
    %v664 = vsel %vm661, %v663, %v659
    %v665 = vmul.f32 1.0, %v664
    %v666 = vxor.u32 %v644, 2147483648
    %v667 = vmul.f32 %v666, 1.442695
    %v668 = vpow.pop %v667
    %v669 = vadd.f32 %v668, 1.0
    %v670 = vrcp.pop %v669
    %v671 = vmul.f32 %v669, %v670
    %v672 = vsub.f32 1.0, %v671
    %v673 = vmul.f32 %v670, %v672
    %v674 = vadd.f32 %v670, %v673
    %vm675 = vweird.f32 %v669
    %vm676 = vweird.f32 %v670
    %vm677 = vmor %vm675, %vm676
    %v678 = vsel %vm677, %v670, %v674
    %v679 = vand.u32 2147483647, %v669
    %vm680 = vcmp.eq.f32.partialorder %v679, 8.507059e+37
    %v681 = vand.u32 %v669, 2147483648
    %v682 = vor.u32 1.1754944e-38, %v681
    %v683 = vsel %vm680, %v682, %v678
    %v684 = vmul.f32 1.0, %v683
    %v685 = vtanh.pop %v645
    %v686 = vxor.u32 %v646, 2147483648
    %v687 = vmul.f32 %v686, 1.442695
    %v688 = vpow.pop %v687
    %v689 = vadd.f32 %v688, 1.0
    %v690 = vrcp.pop %v689
    %v691 = vmul.f32 %v689, %v690
    %v692 = vsub.f32 1.0, %v691
    %v693 = vmul.f32 %v690, %v692
    %v694 = vadd.f32 %v690, %v693
    %vm695 = vweird.f32 %v689
    %vm696 = vweird.f32 %v690
    %vm697 = vmor %vm695, %vm696
    %v698 = vsel %vm697, %v690, %v694
    %v699 = vand.u32 2147483647, %v689
    %vm700 = vcmp.eq.f32.partialorder %v699, 8.507059e+37
    %v701 = vand.u32 %v689, 2147483648
    %v702 = vor.u32 1.1754944e-38, %v701
    %v703 = vsel %vm700, %v702, %v698
    %v704 = vmul.f32 1.0, %v703
    %v706 = vrot.slane %v548, 6
    %v708 = vmul.f32 %v684, %v706
    %v709 = vmul.f32 %v665, %v685
    %v710 = vadd.f32 %v708, %v709
    %v711 = vtanh.pop %v710
    %v712 = vmul.f32 %v704, %v711
    %v714 = vrot.slane %v712, 2
    %716 = vmatpush.msra.mxu0 %v398
    %717 = vmatpush.msra.mxu0 %v394
    %718 = vmatpush.msra.mxu0 %v390
    %719 = vmatpush.msra.mxu0 %v386
    %720 = vmatpush.msra.mxu0 %v382
    %721 = vmatpush.msra.mxu0 %v378
    %722 = vmatpush.msra.mxu0 %v374
    %723 = vmatpush.msra.mxu0 %v370
    %724 = vmatpush.msra.mxu0 %v366
    %725 = vmatpush.msra.mxu0 %v362
    %726 = vmatpush.msra.mxu0 %v358
    %727 = vmatpush.msra.mxu0 %v354
    %728 = vmatpush.msra.mxu0 %v350
    %729 = vmatpush.msra.mxu0 %v346
    %730 = vmatpush.msra.mxu0 %v342
    %731 = vmatpush.msra.mxu0 %v338
    %732 = vmatmul.f32.gmra.mxu0 %v714
    %v733 = vpop.f32.mrf.mxu0
    %v734 = vadd.f32 0.0, %v733
    %735 = vdwg.mxu0
    %736 = vmatpush.msra.mxu0 %v399
    %737 = vmatpush.msra.mxu0 %v395
    %738 = vmatpush.msra.mxu0 %v391
    %739 = vmatpush.msra.mxu0 %v387
    %740 = vmatpush.msra.mxu0 %v383
    %741 = vmatpush.msra.mxu0 %v379
    %742 = vmatpush.msra.mxu0 %v375
    %743 = vmatpush.msra.mxu0 %v371
    %744 = vmatpush.msra.mxu0 %v367
    %745 = vmatpush.msra.mxu0 %v363
    %746 = vmatpush.msra.mxu0 %v359
    %747 = vmatpush.msra.mxu0 %v355
    %748 = vmatpush.msra.mxu0 %v351
    %749 = vmatpush.msra.mxu0 %v347
    %750 = vmatpush.msra.mxu0 %v343
    %751 = vmatpush.msra.mxu0 %v339
    %752 = vmatmul.f32.gmra.mxu0 %v714
    %v753 = vpop.f32.mrf.mxu0
    %v754 = vadd.f32 0.0, %v753
    %755 = vdwg.mxu0
    %756 = vmatpush.msra.mxu0 %v400
    %757 = vmatpush.msra.mxu0 %v396
    %758 = vmatpush.msra.mxu0 %v392
    %759 = vmatpush.msra.mxu0 %v388
    %760 = vmatpush.msra.mxu0 %v384
    %761 = vmatpush.msra.mxu0 %v380
    %762 = vmatpush.msra.mxu0 %v376
    %763 = vmatpush.msra.mxu0 %v372
    %764 = vmatpush.msra.mxu0 %v368
    %765 = vmatpush.msra.mxu0 %v364
    %766 = vmatpush.msra.mxu0 %v360
    %767 = vmatpush.msra.mxu0 %v356
    %768 = vmatpush.msra.mxu0 %v352
    %769 = vmatpush.msra.mxu0 %v348
    %770 = vmatpush.msra.mxu0 %v344
    %771 = vmatpush.msra.mxu0 %v340
    %772 = vmatmul.f32.gmra.mxu0 %v714
    %v773 = vpop.f32.mrf.mxu0
    %v774 = vadd.f32 0.0, %v773
    %775 = vdwg.mxu0
    %776 = vmatpush.msra.mxu0 %v401
    %777 = vmatpush.msra.mxu0 %v397
    %778 = vmatpush.msra.mxu0 %v393
    %779 = vmatpush.msra.mxu0 %v389
    %780 = vmatpush.msra.mxu0 %v385
    %781 = vmatpush.msra.mxu0 %v381
    %782 = vmatpush.msra.mxu0 %v377
    %783 = vmatpush.msra.mxu0 %v373
    %784 = vmatpush.msra.mxu0 %v369
    %785 = vmatpush.msra.mxu0 %v365
    %786 = vmatpush.msra.mxu0 %v361
    %787 = vmatpush.msra.mxu0 %v357
    %788 = vmatpush.msra.mxu0 %v353
    %789 = vmatpush.msra.mxu0 %v349
    %790 = vmatpush.msra.mxu0 %v345
    %791 = vmatpush.msra.mxu0 %v341
    %792 = vmatmul.f32.gmra.mxu0 %v714
    %v793 = vpop.f32.mrf.mxu0
    %v794 = vadd.f32 0.0, %v793
    %795 = vdwg.mxu0
    %v800 = vrot.slane %v734, 4
    %v801 = vrot.slane %v754, 4
    %v802 = vrot.slane %v774, 4
    %v803 = vrot.slane %v794, 4
    %v808 = vadd.f32 %v294, %v800
    %v809 = vadd.f32 %v295, %v801
    %v810 = vadd.f32 %v296, %v802
    %v811 = vadd.f32 %v297, %v803
    %v812 = vxor.u32 %v808, 2147483648
    %v813 = vmul.f32 %v812, 1.442695
    %v814 = vpow.pop %v813
    %v815 = vadd.f32 %v814, 1.0
    %v816 = vrcp.pop %v815
    %v817 = vmul.f32 %v815, %v816
    %v818 = vsub.f32 1.0, %v817
    %v819 = vmul.f32 %v816, %v818
    %v820 = vadd.f32 %v816, %v819
    %vm821 = vweird.f32 %v815
    %vm822 = vweird.f32 %v816
    %vm823 = vmor %vm821, %vm822
    %v824 = vsel %vm823, %v816, %v820
    %v825 = vand.u32 2147483647, %v815
    %vm826 = vcmp.eq.f32.partialorder %v825, 8.507059e+37
    %v827 = vand.u32 %v815, 2147483648
    %v828 = vor.u32 1.1754944e-38, %v827
    %v829 = vsel %vm826, %v828, %v824
    %v830 = vmul.f32 1.0, %v829
    %v831 = vxor.u32 %v809, 2147483648
    %v832 = vmul.f32 %v831, 1.442695
    %v833 = vpow.pop %v832
    %v834 = vadd.f32 %v833, 1.0
    %v835 = vrcp.pop %v834
    %v836 = vmul.f32 %v834, %v835
    %v837 = vsub.f32 1.0, %v836
    %v838 = vmul.f32 %v835, %v837
    %v839 = vadd.f32 %v835, %v838
    %vm840 = vweird.f32 %v834
    %vm841 = vweird.f32 %v835
    %vm842 = vmor %vm840, %vm841
    %v843 = vsel %vm842, %v835, %v839
    %v844 = vand.u32 2147483647, %v834
    %vm845 = vcmp.eq.f32.partialorder %v844, 8.507059e+37
    %v846 = vand.u32 %v834, 2147483648
    %v847 = vor.u32 1.1754944e-38, %v846
    %v848 = vsel %vm845, %v847, %v843
    %v849 = vmul.f32 1.0, %v848
    %v850 = vtanh.pop %v810
    %v851 = vxor.u32 %v811, 2147483648
    %v852 = vmul.f32 %v851, 1.442695
    %v853 = vpow.pop %v852
    %v854 = vadd.f32 %v853, 1.0
    %v855 = vrcp.pop %v854
    %v856 = vmul.f32 %v854, %v855
    %v857 = vsub.f32 1.0, %v856
    %v858 = vmul.f32 %v855, %v857
    %v859 = vadd.f32 %v855, %v858
    %vm860 = vweird.f32 %v854
    %vm861 = vweird.f32 %v855
    %vm862 = vmor %vm860, %vm861
    %v863 = vsel %vm862, %v855, %v859
    %v864 = vand.u32 2147483647, %v854
    %vm865 = vcmp.eq.f32.partialorder %v864, 8.507059e+37
    %v866 = vand.u32 %v854, 2147483648
    %v867 = vor.u32 1.1754944e-38, %v866
    %v868 = vsel %vm865, %v867, %v863
    %v869 = vmul.f32 1.0, %v868
    %v871 = vrot.slane %v710, 6
    %v873 = vmul.f32 %v849, %v871
    %v874 = vmul.f32 %v830, %v850
    %v875 = vadd.f32 %v873, %v874
    %v876 = vtanh.pop %v875
    %v877 = vmul.f32 %v869, %v876
    %v879 = vrot.slane %v877, 4
    %881 = vmatpush.msra.mxu0 %v398
    %882 = vmatpush.msra.mxu0 %v394
    %883 = vmatpush.msra.mxu0 %v390
    %884 = vmatpush.msra.mxu0 %v386
    %885 = vmatpush.msra.mxu0 %v382
    %886 = vmatpush.msra.mxu0 %v378
    %887 = vmatpush.msra.mxu0 %v374
    %888 = vmatpush.msra.mxu0 %v370
    %889 = vmatpush.msra.mxu0 %v366
    %890 = vmatpush.msra.mxu0 %v362
    %891 = vmatpush.msra.mxu0 %v358
    %892 = vmatpush.msra.mxu0 %v354
    %893 = vmatpush.msra.mxu0 %v350
    %894 = vmatpush.msra.mxu0 %v346
    %895 = vmatpush.msra.mxu0 %v342
    %896 = vmatpush.msra.mxu0 %v338
    %897 = vmatmul.f32.gmra.mxu0 %v879
    %v898 = vpop.f32.mrf.mxu0
    %v899 = vadd.f32 0.0, %v898
    %900 = vdwg.mxu0
    %901 = vmatpush.msra.mxu0 %v399
    %902 = vmatpush.msra.mxu0 %v395
    %903 = vmatpush.msra.mxu0 %v391
    %904 = vmatpush.msra.mxu0 %v387
    %905 = vmatpush.msra.mxu0 %v383
    %906 = vmatpush.msra.mxu0 %v379
    %907 = vmatpush.msra.mxu0 %v375
    %908 = vmatpush.msra.mxu0 %v371
    %909 = vmatpush.msra.mxu0 %v367
    %910 = vmatpush.msra.mxu0 %v363
    %911 = vmatpush.msra.mxu0 %v359
    %912 = vmatpush.msra.mxu0 %v355
    %913 = vmatpush.msra.mxu0 %v351
    %914 = vmatpush.msra.mxu0 %v347
    %915 = vmatpush.msra.mxu0 %v343
    %916 = vmatpush.msra.mxu0 %v339
    %917 = vmatmul.f32.gmra.mxu0 %v879
    %v918 = vpop.f32.mrf.mxu0
    %v919 = vadd.f32 0.0, %v918
    %920 = vdwg.mxu0
    %921 = vmatpush.msra.mxu0 %v400
    %922 = vmatpush.msra.mxu0 %v396
    %923 = vmatpush.msra.mxu0 %v392
    %924 = vmatpush.msra.mxu0 %v388
    %925 = vmatpush.msra.mxu0 %v384
    %926 = vmatpush.msra.mxu0 %v380
    %927 = vmatpush.msra.mxu0 %v376
    %928 = vmatpush.msra.mxu0 %v372
    %929 = vmatpush.msra.mxu0 %v368
    %930 = vmatpush.msra.mxu0 %v364
    %931 = vmatpush.msra.mxu0 %v360
    %932 = vmatpush.msra.mxu0 %v356
    %933 = vmatpush.msra.mxu0 %v352
    %934 = vmatpush.msra.mxu0 %v348
    %935 = vmatpush.msra.mxu0 %v344
    %936 = vmatpush.msra.mxu0 %v340
    %937 = vmatmul.f32.gmra.mxu0 %v879
    %v938 = vpop.f32.mrf.mxu0
    %v939 = vadd.f32 0.0, %v938
    %940 = vdwg.mxu0
    %941 = vmatpush.msra.mxu0 %v401
    %942 = vmatpush.msra.mxu0 %v397
    %943 = vmatpush.msra.mxu0 %v393
    %944 = vmatpush.msra.mxu0 %v389
    %945 = vmatpush.msra.mxu0 %v385
    %946 = vmatpush.msra.mxu0 %v381
    %947 = vmatpush.msra.mxu0 %v377
    %948 = vmatpush.msra.mxu0 %v373
    %949 = vmatpush.msra.mxu0 %v369
    %950 = vmatpush.msra.mxu0 %v365
    %951 = vmatpush.msra.mxu0 %v361
    %952 = vmatpush.msra.mxu0 %v357
    %953 = vmatpush.msra.mxu0 %v353
    %954 = vmatpush.msra.mxu0 %v349
    %955 = vmatpush.msra.mxu0 %v345
    %956 = vmatpush.msra.mxu0 %v341
    %957 = vmatmul.f32.gmra.mxu0 %v879
    %v958 = vpop.f32.mrf.mxu0
    %v959 = vadd.f32 0.0, %v958
    %960 = vdwg.mxu0
    %v965 = vrot.slane %v899, 2
    %v966 = vrot.slane %v919, 2
    %v967 = vrot.slane %v939, 2
    %v968 = vrot.slane %v959, 2
    %v973 = vadd.f32 %v306, %v965
    %v974 = vadd.f32 %v307, %v966
    %v975 = vadd.f32 %v308, %v967
    %v976 = vadd.f32 %v309, %v968
    %v977 = vxor.u32 %v973, 2147483648
    %v978 = vmul.f32 %v977, 1.442695
    %v979 = vpow.pop %v978
    %v980 = vadd.f32 %v979, 1.0
    %v981 = vrcp.pop %v980
    %v982 = vmul.f32 %v980, %v981
    %v983 = vsub.f32 1.0, %v982
    %v984 = vmul.f32 %v981, %v983
    %v985 = vadd.f32 %v981, %v984
    %vm986 = vweird.f32 %v980
    %vm987 = vweird.f32 %v981
    %vm988 = vmor %vm986, %vm987
    %v989 = vsel %vm988, %v981, %v985
    %v990 = vand.u32 2147483647, %v980
    %vm991 = vcmp.eq.f32.partialorder %v990, 8.507059e+37
    %v992 = vand.u32 %v980, 2147483648
    %v993 = vor.u32 1.1754944e-38, %v992
    %v994 = vsel %vm991, %v993, %v989
    %v995 = vmul.f32 1.0, %v994
    %v996 = vxor.u32 %v974, 2147483648
    %v997 = vmul.f32 %v996, 1.442695
    %v998 = vpow.pop %v997
    %v999 = vadd.f32 %v998, 1.0
    %v1000 = vrcp.pop %v999
    %v1001 = vmul.f32 %v999, %v1000
    %v1002 = vsub.f32 1.0, %v1001
    %v1003 = vmul.f32 %v1000, %v1002
    %v1004 = vadd.f32 %v1000, %v1003
    %vm1005 = vweird.f32 %v999
    %vm1006 = vweird.f32 %v1000
    %vm1007 = vmor %vm1005, %vm1006
    %v1008 = vsel %vm1007, %v1000, %v1004
    %v1009 = vand.u32 2147483647, %v999
    %vm1010 = vcmp.eq.f32.partialorder %v1009, 8.507059e+37
    %v1011 = vand.u32 %v999, 2147483648
    %v1012 = vor.u32 1.1754944e-38, %v1011
    %v1013 = vsel %vm1010, %v1012, %v1008
    %v1014 = vmul.f32 1.0, %v1013
    %v1015 = vtanh.pop %v975
    %v1016 = vxor.u32 %v976, 2147483648
    %v1017 = vmul.f32 %v1016, 1.442695
    %v1018 = vpow.pop %v1017
    %v1019 = vadd.f32 %v1018, 1.0
    %v1020 = vrcp.pop %v1019
    %v1021 = vmul.f32 %v1019, %v1020
    %v1022 = vsub.f32 1.0, %v1021
    %v1023 = vmul.f32 %v1020, %v1022
    %v1024 = vadd.f32 %v1020, %v1023
    %vm1025 = vweird.f32 %v1019
    %vm1026 = vweird.f32 %v1020
    %vm1027 = vmor %vm1025, %vm1026
    %v1028 = vsel %vm1027, %v1020, %v1024
    %v1029 = vand.u32 2147483647, %v1019
    %vm1030 = vcmp.eq.f32.partialorder %v1029, 8.507059e+37
    %v1031 = vand.u32 %v1019, 2147483648
    %v1032 = vor.u32 1.1754944e-38, %v1031
    %v1033 = vsel %vm1030, %v1032, %v1028
    %v1034 = vmul.f32 1.0, %v1033
    %v1036 = vrot.slane %v875, 6
    %v1038 = vmul.f32 %v1014, %v1036
    %v1039 = vmul.f32 %v995, %v1015
    %v1040 = vadd.f32 %v1038, %v1039
    %v1041 = vtanh.pop %v1040
    %v1042 = vmul.f32 %v1034, %v1041
    %v1044 = vrot.slane %v1042, 6
    %1046 = vmatpush.msra.mxu0 %v398
    %1047 = vmatpush.msra.mxu0 %v394
    %1048 = vmatpush.msra.mxu0 %v390
    %1049 = vmatpush.msra.mxu0 %v386
    %1050 = vmatpush.msra.mxu0 %v382
    %1051 = vmatpush.msra.mxu0 %v378
    %1052 = vmatpush.msra.mxu0 %v374
    %1053 = vmatpush.msra.mxu0 %v370
    %1054 = vmatpush.msra.mxu0 %v366
    %1055 = vmatpush.msra.mxu0 %v362
    %1056 = vmatpush.msra.mxu0 %v358
    %1057 = vmatpush.msra.mxu0 %v354
    %1058 = vmatpush.msra.mxu0 %v350
    %1059 = vmatpush.msra.mxu0 %v346
    %1060 = vmatpush.msra.mxu0 %v342
    %1061 = vmatpush.msra.mxu0 %v338
    %1062 = vmatmul.f32.gmra.mxu0 %v1044
    %v1063 = vpop.f32.mrf.mxu0
    %v1064 = vadd.f32 0.0, %v1063
    %1065 = vdwg.mxu0
    %1066 = vmatpush.msra.mxu0 %v399
    %1067 = vmatpush.msra.mxu0 %v395
    %1068 = vmatpush.msra.mxu0 %v391
    %1069 = vmatpush.msra.mxu0 %v387
    %1070 = vmatpush.msra.mxu0 %v383
    %1071 = vmatpush.msra.mxu0 %v379
    %1072 = vmatpush.msra.mxu0 %v375
    %1073 = vmatpush.msra.mxu0 %v371
    %1074 = vmatpush.msra.mxu0 %v367
    %1075 = vmatpush.msra.mxu0 %v363
    %1076 = vmatpush.msra.mxu0 %v359
    %1077 = vmatpush.msra.mxu0 %v355
    %1078 = vmatpush.msra.mxu0 %v351
    %1079 = vmatpush.msra.mxu0 %v347
    %1080 = vmatpush.msra.mxu0 %v343
    %1081 = vmatpush.msra.mxu0 %v339
    %1082 = vmatmul.f32.gmra.mxu0 %v1044
    %v1083 = vpop.f32.mrf.mxu0
    %v1084 = vadd.f32 0.0, %v1083
    %1085 = vdwg.mxu0
    %1086 = vmatpush.msra.mxu0 %v400
    %1087 = vmatpush.msra.mxu0 %v396
    %1088 = vmatpush.msra.mxu0 %v392
    %1089 = vmatpush.msra.mxu0 %v388
    %1090 = vmatpush.msra.mxu0 %v384
    %1091 = vmatpush.msra.mxu0 %v380
    %1092 = vmatpush.msra.mxu0 %v376
    %1093 = vmatpush.msra.mxu0 %v372
    %1094 = vmatpush.msra.mxu0 %v368
    %1095 = vmatpush.msra.mxu0 %v364
    %1096 = vmatpush.msra.mxu0 %v360
    %1097 = vmatpush.msra.mxu0 %v356
    %1098 = vmatpush.msra.mxu0 %v352
    %1099 = vmatpush.msra.mxu0 %v348
    %1100 = vmatpush.msra.mxu0 %v344
    %1101 = vmatpush.msra.mxu0 %v340
    %1102 = vmatmul.f32.gmra.mxu0 %v1044
    %v1103 = vpop.f32.mrf.mxu0
    %v1104 = vadd.f32 0.0, %v1103
    %1105 = vdwg.mxu0
    %1106 = vmatpush.msra.mxu0 %v401
    %1107 = vmatpush.msra.mxu0 %v397
    %1108 = vmatpush.msra.mxu0 %v393
    %1109 = vmatpush.msra.mxu0 %v389
    %1110 = vmatpush.msra.mxu0 %v385
    %1111 = vmatpush.msra.mxu0 %v381
    %1112 = vmatpush.msra.mxu0 %v377
    %1113 = vmatpush.msra.mxu0 %v373
    %1114 = vmatpush.msra.mxu0 %v369
    %1115 = vmatpush.msra.mxu0 %v365
    %1116 = vmatpush.msra.mxu0 %v361
    %1117 = vmatpush.msra.mxu0 %v357
    %1118 = vmatpush.msra.mxu0 %v353
    %1119 = vmatpush.msra.mxu0 %v349
    %1120 = vmatpush.msra.mxu0 %v345
    %1121 = vmatpush.msra.mxu0 %v341
    %1122 = vmatmul.f32.gmra.mxu0 %v1044
    %v1123 = vpop.f32.mrf.mxu0
    %v1124 = vadd.f32 0.0, %v1123
    %1125 = vdwg.mxu0
    %v1126 = vadd.f32 %v322, %v1064
    %v1127 = vadd.f32 %v323, %v1084
    %v1128 = vadd.f32 %v324, %v1104
    %v1129 = vadd.f32 %v325, %v1124
    %v1130 = vxor.u32 %v1126, 2147483648
    %v1131 = vmul.f32 %v1130, 1.442695
    %v1132 = vpow.pop %v1131
    %v1133 = vadd.f32 %v1132, 1.0
    %v1134 = vrcp.pop %v1133
    %v1135 = vmul.f32 %v1133, %v1134
    %v1136 = vsub.f32 1.0, %v1135
    %v1137 = vmul.f32 %v1134, %v1136
    %v1138 = vadd.f32 %v1134, %v1137
    %vm1139 = vweird.f32 %v1133
    %vm1140 = vweird.f32 %v1134
    %vm1141 = vmor %vm1139, %vm1140
    %v1142 = vsel %vm1141, %v1134, %v1138
    %v1143 = vand.u32 2147483647, %v1133
    %vm1144 = vcmp.eq.f32.partialorder %v1143, 8.507059e+37
    %v1145 = vand.u32 %v1133, 2147483648
    %v1146 = vor.u32 1.1754944e-38, %v1145
    %v1147 = vsel %vm1144, %v1146, %v1142
    %v1148 = vmul.f32 1.0, %v1147
    %v1149 = vxor.u32 %v1127, 2147483648
    %v1150 = vmul.f32 %v1149, 1.442695
    %v1151 = vpow.pop %v1150
    %v1152 = vadd.f32 %v1151, 1.0
    %v1153 = vrcp.pop %v1152
    %v1154 = vmul.f32 %v1152, %v1153
    %v1155 = vsub.f32 1.0, %v1154
    %v1156 = vmul.f32 %v1153, %v1155
    %v1157 = vadd.f32 %v1153, %v1156
    %vm1158 = vweird.f32 %v1152
    %vm1159 = vweird.f32 %v1153
    %vm1160 = vmor %vm1158, %vm1159
    %v1161 = vsel %vm1160, %v1153, %v1157
    %v1162 = vand.u32 2147483647, %v1152
    %vm1163 = vcmp.eq.f32.partialorder %v1162, 8.507059e+37
    %v1164 = vand.u32 %v1152, 2147483648
    %v1165 = vor.u32 1.1754944e-38, %v1164
    %v1166 = vsel %vm1163, %v1165, %v1161
    %v1167 = vmul.f32 1.0, %v1166
    %v1168 = vtanh.pop %v1128
    %v1169 = vxor.u32 %v1129, 2147483648
    %v1170 = vmul.f32 %v1169, 1.442695
    %v1171 = vpow.pop %v1170
    %v1172 = vadd.f32 %v1171, 1.0
    %v1173 = vrcp.pop %v1172
    %v1174 = vmul.f32 %v1172, %v1173
    %v1175 = vsub.f32 1.0, %v1174
    %v1176 = vmul.f32 %v1173, %v1175
    %v1177 = vadd.f32 %v1173, %v1176
    %vm1178 = vweird.f32 %v1172
    %vm1179 = vweird.f32 %v1173
    %vm1180 = vmor %vm1178, %vm1179
    %v1181 = vsel %vm1180, %v1173, %v1177
    %v1182 = vand.u32 2147483647, %v1172
    %vm1183 = vcmp.eq.f32.partialorder %v1182, 8.507059e+37
    %v1184 = vand.u32 %v1172, 2147483648
    %v1185 = vor.u32 1.1754944e-38, %v1184
    %v1186 = vsel %vm1183, %v1185, %v1181
    %v1187 = vmul.f32 1.0, %v1186
    %v1189 = vrot.slane %v1040, 6
    %v1191 = vmul.f32 %v1167, %v1189
    %v1192 = vmul.f32 %v1148, %v1168
    %v1193 = vadd.f32 %v1191, %v1192
    %v1194 = vtanh.pop %v1193
    %v1195 = vmul.f32 %v1187, %v1194
    %1196 = vmatpush.msra.mxu0 %v398
    %1197 = vmatpush.msra.mxu0 %v394
    %1198 = vmatpush.msra.mxu0 %v390
    %1199 = vmatpush.msra.mxu0 %v386
    %1200 = vmatpush.msra.mxu0 %v382
    %1201 = vmatpush.msra.mxu0 %v378
    %1202 = vmatpush.msra.mxu0 %v374
    %1203 = vmatpush.msra.mxu0 %v370
    %1204 = vmatpush.msra.mxu0 %v366
    %1205 = vmatpush.msra.mxu0 %v362
    %1206 = vmatpush.msra.mxu0 %v358
    %1207 = vmatpush.msra.mxu0 %v354
    %1208 = vmatpush.msra.mxu0 %v350
    %1209 = vmatpush.msra.mxu0 %v346
    %1210 = vmatpush.msra.mxu0 %v342
    %1211 = vmatpush.msra.mxu0 %v338
    %1212 = vmatmul.f32.gmra.mxu0 %v1195
    %v1213 = vpop.f32.mrf.mxu0
    %v1214 = vadd.f32 0.0, %v1213
    %1215 = vdwg.mxu0
    %1216 = vmatpush.msra.mxu0 %v399
    %1217 = vmatpush.msra.mxu0 %v395
    %1218 = vmatpush.msra.mxu0 %v391
    %1219 = vmatpush.msra.mxu0 %v387
    %1220 = vmatpush.msra.mxu0 %v383
    %1221 = vmatpush.msra.mxu0 %v379
    %1222 = vmatpush.msra.mxu0 %v375
    %1223 = vmatpush.msra.mxu0 %v371
    %1224 = vmatpush.msra.mxu0 %v367
    %1225 = vmatpush.msra.mxu0 %v363
    %1226 = vmatpush.msra.mxu0 %v359
    %1227 = vmatpush.msra.mxu0 %v355
    %1228 = vmatpush.msra.mxu0 %v351
    %1229 = vmatpush.msra.mxu0 %v347
    %1230 = vmatpush.msra.mxu0 %v343
    %1231 = vmatpush.msra.mxu0 %v339
    %1232 = vmatmul.f32.gmra.mxu0 %v1195
    %v1233 = vpop.f32.mrf.mxu0
    %v1234 = vadd.f32 0.0, %v1233
    %1235 = vdwg.mxu0
    %1236 = vmatpush.msra.mxu0 %v400
    %1237 = vmatpush.msra.mxu0 %v396
    %1238 = vmatpush.msra.mxu0 %v392
    %1239 = vmatpush.msra.mxu0 %v388
    %1240 = vmatpush.msra.mxu0 %v384
    %1241 = vmatpush.msra.mxu0 %v380
    %1242 = vmatpush.msra.mxu0 %v376
    %1243 = vmatpush.msra.mxu0 %v372
    %1244 = vmatpush.msra.mxu0 %v368
    %1245 = vmatpush.msra.mxu0 %v364
    %1246 = vmatpush.msra.mxu0 %v360
    %1247 = vmatpush.msra.mxu0 %v356
    %1248 = vmatpush.msra.mxu0 %v352
    %1249 = vmatpush.msra.mxu0 %v348
    %1250 = vmatpush.msra.mxu0 %v344
    %1251 = vmatpush.msra.mxu0 %v340
    %1252 = vmatmul.f32.gmra.mxu0 %v1195
    %v1253 = vpop.f32.mrf.mxu0
    %v1254 = vadd.f32 0.0, %v1253
    %1255 = vdwg.mxu0
    %1256 = vmatpush.msra.mxu0 %v401
    %1257 = vmatpush.msra.mxu0 %v397
    %1258 = vmatpush.msra.mxu0 %v393
    %1259 = vmatpush.msra.mxu0 %v389
    %1260 = vmatpush.msra.mxu0 %v385
    %1261 = vmatpush.msra.mxu0 %v381
    %1262 = vmatpush.msra.mxu0 %v377
    %1263 = vmatpush.msra.mxu0 %v373
    %1264 = vmatpush.msra.mxu0 %v369
    %1265 = vmatpush.msra.mxu0 %v365
    %1266 = vmatpush.msra.mxu0 %v361
    %1267 = vmatpush.msra.mxu0 %v357
    %1268 = vmatpush.msra.mxu0 %v353
    %1269 = vmatpush.msra.mxu0 %v349
    %1270 = vmatpush.msra.mxu0 %v345
    %1271 = vmatpush.msra.mxu0 %v341
    %1272 = vmatmul.f32.gmra.mxu0 %v1195
    %v1273 = vpop.f32.mrf.mxu0
    %v1274 = vadd.f32 0.0, %v1273
    %1275 = vdwg.mxu0
    %v1280 = vrot.slane %v1214, 6
    %v1281 = vrot.slane %v1234, 6
    %v1282 = vrot.slane %v1254, 6
    %v1283 = vrot.slane %v1274, 6
    %v1288 = vadd.f32 %v334, %v1280
    %v1289 = vadd.f32 %v335, %v1281
    %v1290 = vadd.f32 %v336, %v1282
    %v1291 = vadd.f32 %v337, %v1283
    %v1292 = vxor.u32 %v1288, 2147483648
    %v1293 = vmul.f32 %v1292, 1.442695
    %v1294 = vpow.pop %v1293
    %v1295 = vadd.f32 %v1294, 1.0
    %v1296 = vrcp.pop %v1295
    %v1297 = vmul.f32 %v1295, %v1296
    %v1298 = vsub.f32 1.0, %v1297
    %v1299 = vmul.f32 %v1296, %v1298
    %v1300 = vadd.f32 %v1296, %v1299
    %vm1301 = vweird.f32 %v1295
    %vm1302 = vweird.f32 %v1296
    %vm1303 = vmor %vm1301, %vm1302
    %v1304 = vsel %vm1303, %v1296, %v1300
    %v1305 = vand.u32 2147483647, %v1295
    %vm1306 = vcmp.eq.f32.partialorder %v1305, 8.507059e+37
    %v1307 = vand.u32 %v1295, 2147483648
    %v1308 = vor.u32 1.1754944e-38, %v1307
    %v1309 = vsel %vm1306, %v1308, %v1304
    %v1310 = vmul.f32 1.0, %v1309
    %v1311 = vxor.u32 %v1289, 2147483648
    %v1312 = vmul.f32 %v1311, 1.442695
    %v1313 = vpow.pop %v1312
    %v1314 = vadd.f32 %v1313, 1.0
    %v1315 = vrcp.pop %v1314
    %v1316 = vmul.f32 %v1314, %v1315
    %v1317 = vsub.f32 1.0, %v1316
    %v1318 = vmul.f32 %v1315, %v1317
    %v1319 = vadd.f32 %v1315, %v1318
    %vm1320 = vweird.f32 %v1314
    %vm1321 = vweird.f32 %v1315
    %vm1322 = vmor %vm1320, %vm1321
    %v1323 = vsel %vm1322, %v1315, %v1319
    %v1324 = vand.u32 2147483647, %v1314
    %vm1325 = vcmp.eq.f32.partialorder %v1324, 8.507059e+37
    %v1326 = vand.u32 %v1314, 2147483648
    %v1327 = vor.u32 1.1754944e-38, %v1326
    %v1328 = vsel %vm1325, %v1327, %v1323
    %v1329 = vmul.f32 1.0, %v1328
    %v1330 = vtanh.pop %v1290
    %v1331 = vxor.u32 %v1291, 2147483648
    %v1332 = vmul.f32 %v1331, 1.442695
    %v1333 = vpow.pop %v1332
    %v1334 = vadd.f32 %v1333, 1.0
    %v1335 = vrcp.pop %v1334
    %v1336 = vmul.f32 %v1334, %v1335
    %v1337 = vsub.f32 1.0, %v1336
    %v1338 = vmul.f32 %v1335, %v1337
    %v1339 = vadd.f32 %v1335, %v1338
    %vm1340 = vweird.f32 %v1334
    %vm1341 = vweird.f32 %v1335
    %vm1342 = vmor %vm1340, %vm1341
    %v1343 = vsel %vm1342, %v1335, %v1339
    %v1344 = vand.u32 2147483647, %v1334
    %vm1345 = vcmp.eq.f32.partialorder %v1344, 8.507059e+37
    %v1346 = vand.u32 %v1334, 2147483648
    %v1347 = vor.u32 1.1754944e-38, %v1346
    %v1348 = vsel %vm1345, %v1347, %v1343
    %v1349 = vmul.f32 1.0, %v1348
    %v1351 = vrot.slane %v1193, 6
    %v1353 = vmul.f32 %v1329, %v1351
    %v1354 = vmul.f32 %v1310, %v1330
    %v1355 = vadd.f32 %v1353, %v1354
    %v1356 = vtanh.pop %v1355
    %v1357 = vmul.f32 %v1349, %v1356
    %v1359 = vrot.slane %v1357, 2
    %1361 = vmatpush.msra.mxu0 %v398
    %1362 = vmatpush.msra.mxu0 %v394
    %1363 = vmatpush.msra.mxu0 %v390
    %1364 = vmatpush.msra.mxu0 %v386
    %1365 = vmatpush.msra.mxu0 %v382
    %1366 = vmatpush.msra.mxu0 %v378
    %1367 = vmatpush.msra.mxu0 %v374
    %1368 = vmatpush.msra.mxu0 %v370
    %1369 = vmatpush.msra.mxu0 %v366
    %1370 = vmatpush.msra.mxu0 %v362
    %1371 = vmatpush.msra.mxu0 %v358
    %1372 = vmatpush.msra.mxu0 %v354
    %1373 = vmatpush.msra.mxu0 %v350
    %1374 = vmatpush.msra.mxu0 %v346
    %1375 = vmatpush.msra.mxu0 %v342
    %1376 = vmatpush.msra.mxu0 %v338
    %1377 = vmatmul.f32.gmra.mxu0 %v1359
    %v1378 = vpop.f32.mrf.mxu0
    %v1379 = vadd.f32 0.0, %v1378
    %1380 = vdwg.mxu0
    %1381 = vmatpush.msra.mxu0 %v399
    %1382 = vmatpush.msra.mxu0 %v395
    %1383 = vmatpush.msra.mxu0 %v391
    %1384 = vmatpush.msra.mxu0 %v387
    %1385 = vmatpush.msra.mxu0 %v383
    %1386 = vmatpush.msra.mxu0 %v379
    %1387 = vmatpush.msra.mxu0 %v375
    %1388 = vmatpush.msra.mxu0 %v371
    %1389 = vmatpush.msra.mxu0 %v367
    %1390 = vmatpush.msra.mxu0 %v363
    %1391 = vmatpush.msra.mxu0 %v359
    %1392 = vmatpush.msra.mxu0 %v355
    %1393 = vmatpush.msra.mxu0 %v351
    %1394 = vmatpush.msra.mxu0 %v347
    %1395 = vmatpush.msra.mxu0 %v343
    %1396 = vmatpush.msra.mxu0 %v339
    %1397 = vmatmul.f32.gmra.mxu0 %v1359
    %v1398 = vpop.f32.mrf.mxu0
    %v1399 = vadd.f32 0.0, %v1398
    %1400 = vdwg.mxu0
    %1401 = vmatpush.msra.mxu0 %v400
    %1402 = vmatpush.msra.mxu0 %v396
    %1403 = vmatpush.msra.mxu0 %v392
    %1404 = vmatpush.msra.mxu0 %v388
    %1405 = vmatpush.msra.mxu0 %v384
    %1406 = vmatpush.msra.mxu0 %v380
    %1407 = vmatpush.msra.mxu0 %v376
    %1408 = vmatpush.msra.mxu0 %v372
    %1409 = vmatpush.msra.mxu0 %v368
    %1410 = vmatpush.msra.mxu0 %v364
    %1411 = vmatpush.msra.mxu0 %v360
    %1412 = vmatpush.msra.mxu0 %v356
    %1413 = vmatpush.msra.mxu0 %v352
    %1414 = vmatpush.msra.mxu0 %v348
    %1415 = vmatpush.msra.mxu0 %v344
    %1416 = vmatpush.msra.mxu0 %v340
    %1417 = vmatmul.f32.gmra.mxu0 %v1359
    %v1418 = vpop.f32.mrf.mxu0
    %v1419 = vadd.f32 0.0, %v1418
    %1420 = vdwg.mxu0
    %1421 = vmatpush.msra.mxu0 %v401
    %1422 = vmatpush.msra.mxu0 %v397
    %1423 = vmatpush.msra.mxu0 %v393
    %1424 = vmatpush.msra.mxu0 %v389
    %1425 = vmatpush.msra.mxu0 %v385
    %1426 = vmatpush.msra.mxu0 %v381
    %1427 = vmatpush.msra.mxu0 %v377
    %1428 = vmatpush.msra.mxu0 %v373
    %1429 = vmatpush.msra.mxu0 %v369
    %1430 = vmatpush.msra.mxu0 %v365
    %1431 = vmatpush.msra.mxu0 %v361
    %1432 = vmatpush.msra.mxu0 %v357
    %1433 = vmatpush.msra.mxu0 %v353
    %1434 = vmatpush.msra.mxu0 %v349
    %1435 = vmatpush.msra.mxu0 %v345
    %1436 = vmatpush.msra.mxu0 %v341
    %1437 = vmatmul.f32.gmra.mxu0 %v1359
    %v1438 = vpop.f32.mrf.mxu0
    %v1439 = vadd.f32 0.0, %v1438
    %1440 = vdwg.mxu0
    %v1445 = vrot.slane %v1379, 4
    %v1446 = vrot.slane %v1399, 4
    %v1447 = vrot.slane %v1419, 4
    %v1448 = vrot.slane %v1439, 4
    %v1453 = vadd.f32 %v322, %v1445
    %v1454 = vadd.f32 %v323, %v1446
    %v1455 = vadd.f32 %v324, %v1447
    %v1456 = vadd.f32 %v325, %v1448
    %v1457 = vxor.u32 %v1453, 2147483648
    %v1458 = vmul.f32 %v1457, 1.442695
    %v1459 = vpow.pop %v1458
    %v1460 = vadd.f32 %v1459, 1.0
    %v1461 = vrcp.pop %v1460
    %v1462 = vmul.f32 %v1460, %v1461
    %v1463 = vsub.f32 1.0, %v1462
    %v1464 = vmul.f32 %v1461, %v1463
    %v1465 = vadd.f32 %v1461, %v1464
    %vm1466 = vweird.f32 %v1460
    %vm1467 = vweird.f32 %v1461
    %vm1468 = vmor %vm1466, %vm1467
    %v1469 = vsel %vm1468, %v1461, %v1465
    %v1470 = vand.u32 2147483647, %v1460
    %vm1471 = vcmp.eq.f32.partialorder %v1470, 8.507059e+37
    %v1472 = vand.u32 %v1460, 2147483648
    %v1473 = vor.u32 1.1754944e-38, %v1472
    %v1474 = vsel %vm1471, %v1473, %v1469
    %v1475 = vmul.f32 1.0, %v1474
    %v1476 = vxor.u32 %v1454, 2147483648
    %v1477 = vmul.f32 %v1476, 1.442695
    %v1478 = vpow.pop %v1477
    %v1479 = vadd.f32 %v1478, 1.0
    %v1480 = vrcp.pop %v1479
    %v1481 = vmul.f32 %v1479, %v1480
    %v1482 = vsub.f32 1.0, %v1481
    %v1483 = vmul.f32 %v1480, %v1482
    %v1484 = vadd.f32 %v1480, %v1483
    %vm1485 = vweird.f32 %v1479
    %vm1486 = vweird.f32 %v1480
    %vm1487 = vmor %vm1485, %vm1486
    %v1488 = vsel %vm1487, %v1480, %v1484
    %v1489 = vand.u32 2147483647, %v1479
    %vm1490 = vcmp.eq.f32.partialorder %v1489, 8.507059e+37
    %v1491 = vand.u32 %v1479, 2147483648
    %v1492 = vor.u32 1.1754944e-38, %v1491
    %v1493 = vsel %vm1490, %v1492, %v1488
    %v1494 = vmul.f32 1.0, %v1493
    %v1495 = vtanh.pop %v1455
    %v1496 = vxor.u32 %v1456, 2147483648
    %v1497 = vmul.f32 %v1496, 1.442695
    %v1498 = vpow.pop %v1497
    %v1499 = vadd.f32 %v1498, 1.0
    %v1500 = vrcp.pop %v1499
    %v1501 = vmul.f32 %v1499, %v1500
    %v1502 = vsub.f32 1.0, %v1501
    %v1503 = vmul.f32 %v1500, %v1502
    %v1504 = vadd.f32 %v1500, %v1503
    %vm1505 = vweird.f32 %v1499
    %vm1506 = vweird.f32 %v1500
    %vm1507 = vmor %vm1505, %vm1506
    %v1508 = vsel %vm1507, %v1500, %v1504
    %v1509 = vand.u32 2147483647, %v1499
    %vm1510 = vcmp.eq.f32.partialorder %v1509, 8.507059e+37
    %v1511 = vand.u32 %v1499, 2147483648
    %v1512 = vor.u32 1.1754944e-38, %v1511
    %v1513 = vsel %vm1510, %v1512, %v1508
    %v1514 = vmul.f32 1.0, %v1513
    %v1516 = vrot.slane %v1355, 6
    %v1518 = vmul.f32 %v1494, %v1516
    %v1519 = vmul.f32 %v1475, %v1495
    %v1520 = vadd.f32 %v1518, %v1519
    %v1521 = vtanh.pop %v1520
    %v1522 = vmul.f32 %v1514, %v1521
    %v1524 = vrot.slane %v1522, 4
    %1526 = vmatpush.msra.mxu0 %v398
    %1527 = vmatpush.msra.mxu0 %v394
    %1528 = vmatpush.msra.mxu0 %v390
    %1529 = vmatpush.msra.mxu0 %v386
    %1530 = vmatpush.msra.mxu0 %v382
    %1531 = vmatpush.msra.mxu0 %v378
    %1532 = vmatpush.msra.mxu0 %v374
    %1533 = vmatpush.msra.mxu0 %v370
    %1534 = vmatpush.msra.mxu0 %v366
    %1535 = vmatpush.msra.mxu0 %v362
    %1536 = vmatpush.msra.mxu0 %v358
    %1537 = vmatpush.msra.mxu0 %v354
    %1538 = vmatpush.msra.mxu0 %v350
    %1539 = vmatpush.msra.mxu0 %v346
    %1540 = vmatpush.msra.mxu0 %v342
    %1541 = vmatpush.msra.mxu0 %v338
    %1542 = vmatmul.f32.gmra.mxu0 %v1524
    %v1543 = vpop.f32.mrf.mxu0
    %v1544 = vadd.f32 0.0, %v1543
    %1545 = vdwg.mxu0
    %1546 = vmatpush.msra.mxu0 %v399
    %1547 = vmatpush.msra.mxu0 %v395
    %1548 = vmatpush.msra.mxu0 %v391
    %1549 = vmatpush.msra.mxu0 %v387
    %1550 = vmatpush.msra.mxu0 %v383
    %1551 = vmatpush.msra.mxu0 %v379
    %1552 = vmatpush.msra.mxu0 %v375
    %1553 = vmatpush.msra.mxu0 %v371
    %1554 = vmatpush.msra.mxu0 %v367
    %1555 = vmatpush.msra.mxu0 %v363
    %1556 = vmatpush.msra.mxu0 %v359
    %1557 = vmatpush.msra.mxu0 %v355
    %1558 = vmatpush.msra.mxu0 %v351
    %1559 = vmatpush.msra.mxu0 %v347
    %1560 = vmatpush.msra.mxu0 %v343
    %1561 = vmatpush.msra.mxu0 %v339
    %1562 = vmatmul.f32.gmra.mxu0 %v1524
    %v1563 = vpop.f32.mrf.mxu0
    %v1564 = vadd.f32 0.0, %v1563
    %1565 = vdwg.mxu0
    %1566 = vmatpush.msra.mxu0 %v400
    %1567 = vmatpush.msra.mxu0 %v396
    %1568 = vmatpush.msra.mxu0 %v392
    %1569 = vmatpush.msra.mxu0 %v388
    %1570 = vmatpush.msra.mxu0 %v384
    %1571 = vmatpush.msra.mxu0 %v380
    %1572 = vmatpush.msra.mxu0 %v376
    %1573 = vmatpush.msra.mxu0 %v372
    %1574 = vmatpush.msra.mxu0 %v368
    %1575 = vmatpush.msra.mxu0 %v364
    %1576 = vmatpush.msra.mxu0 %v360
    %1577 = vmatpush.msra.mxu0 %v356
    %1578 = vmatpush.msra.mxu0 %v352
    %1579 = vmatpush.msra.mxu0 %v348
    %1580 = vmatpush.msra.mxu0 %v344
    %1581 = vmatpush.msra.mxu0 %v340
    %1582 = vmatmul.f32.gmra.mxu0 %v1524
    %v1583 = vpop.f32.mrf.mxu0
    %v1584 = vadd.f32 0.0, %v1583
    %1585 = vdwg.mxu0
    %1586 = vmatpush.msra.mxu0 %v401
    %1587 = vmatpush.msra.mxu0 %v397
    %1588 = vmatpush.msra.mxu0 %v393
    %1589 = vmatpush.msra.mxu0 %v389
    %1590 = vmatpush.msra.mxu0 %v385
    %1591 = vmatpush.msra.mxu0 %v381
    %1592 = vmatpush.msra.mxu0 %v377
    %1593 = vmatpush.msra.mxu0 %v373
    %1594 = vmatpush.msra.mxu0 %v369
    %1595 = vmatpush.msra.mxu0 %v365
    %1596 = vmatpush.msra.mxu0 %v361
    %1597 = vmatpush.msra.mxu0 %v357
    %1598 = vmatpush.msra.mxu0 %v353
    %1599 = vmatpush.msra.mxu0 %v349
    %1600 = vmatpush.msra.mxu0 %v345
    %1601 = vmatpush.msra.mxu0 %v341
    %1602 = vmatmul.f32.gmra.mxu0 %v1524
    %v1603 = vpop.f32.mrf.mxu0
    %v1604 = vadd.f32 0.0, %v1603
    %1605 = vdwg.mxu0
    %v1610 = vrot.slane %v1544, 2
    %v1611 = vrot.slane %v1564, 2
    %v1612 = vrot.slane %v1584, 2
    %v1613 = vrot.slane %v1604, 2
    %v1618 = vadd.f32 %v334, %v1610
    %v1619 = vadd.f32 %v335, %v1611
    %v1620 = vadd.f32 %v336, %v1612
    %v1621 = vadd.f32 %v337, %v1613
    %v1622 = vxor.u32 %v1618, 2147483648
    %v1623 = vmul.f32 %v1622, 1.442695
    %v1624 = vpow.pop %v1623
    %v1625 = vadd.f32 %v1624, 1.0
    %v1626 = vrcp.pop %v1625
    %v1627 = vmul.f32 %v1625, %v1626
    %v1628 = vsub.f32 1.0, %v1627
    %v1629 = vmul.f32 %v1626, %v1628
    %v1630 = vadd.f32 %v1626, %v1629
    %vm1631 = vweird.f32 %v1625
    %vm1632 = vweird.f32 %v1626
    %vm1633 = vmor %vm1631, %vm1632
    %v1634 = vsel %vm1633, %v1626, %v1630
    %v1635 = vand.u32 2147483647, %v1625
    %vm1636 = vcmp.eq.f32.partialorder %v1635, 8.507059e+37
    %v1637 = vand.u32 %v1625, 2147483648
    %v1638 = vor.u32 1.1754944e-38, %v1637
    %v1639 = vsel %vm1636, %v1638, %v1634
    %v1640 = vmul.f32 1.0, %v1639
    %v1641 = vxor.u32 %v1619, 2147483648
    %v1642 = vmul.f32 %v1641, 1.442695
    %v1643 = vpow.pop %v1642
    %v1644 = vadd.f32 %v1643, 1.0
    %v1645 = vrcp.pop %v1644
    %v1646 = vmul.f32 %v1644, %v1645
    %v1647 = vsub.f32 1.0, %v1646
    %v1648 = vmul.f32 %v1645, %v1647
    %v1649 = vadd.f32 %v1645, %v1648
    %vm1650 = vweird.f32 %v1644
    %vm1651 = vweird.f32 %v1645
    %vm1652 = vmor %vm1650, %vm1651
    %v1653 = vsel %vm1652, %v1645, %v1649
    %v1654 = vand.u32 2147483647, %v1644
    %vm1655 = vcmp.eq.f32.partialorder %v1654, 8.507059e+37
    %v1656 = vand.u32 %v1644, 2147483648
    %v1657 = vor.u32 1.1754944e-38, %v1656
    %v1658 = vsel %vm1655, %v1657, %v1653
    %v1659 = vmul.f32 1.0, %v1658
    %v1660 = vtanh.pop %v1620
    %v1661 = vxor.u32 %v1621, 2147483648
    %v1662 = vmul.f32 %v1661, 1.442695
    %v1663 = vpow.pop %v1662
    %v1664 = vadd.f32 %v1663, 1.0
    %v1665 = vrcp.pop %v1664
    %v1666 = vmul.f32 %v1664, %v1665
    %v1667 = vsub.f32 1.0, %v1666
    %v1668 = vmul.f32 %v1665, %v1667
    %v1669 = vadd.f32 %v1665, %v1668
    %vm1670 = vweird.f32 %v1664
    %vm1671 = vweird.f32 %v1665
    %vm1672 = vmor %vm1670, %vm1671
    %v1673 = vsel %vm1672, %v1665, %v1669
    %v1674 = vand.u32 2147483647, %v1664
    %vm1675 = vcmp.eq.f32.partialorder %v1674, 8.507059e+37
    %v1676 = vand.u32 %v1664, 2147483648
    %v1677 = vor.u32 1.1754944e-38, %v1676
    %v1678 = vsel %vm1675, %v1677, %v1673
    %v1679 = vmul.f32 1.0, %v1678
    %v1681 = vrot.slane %v1520, 6
    %v1683 = vmul.f32 %v1659, %v1681
    %v1684 = vmul.f32 %v1640, %v1660
    %v1685 = vadd.f32 %v1683, %v1684
    %v1686 = vtanh.pop %v1685
    %v1687 = vmul.f32 %v1679, %v1686
    %vm1688 = vcmp.lt.s32.totalorder %v226, 32
    %v1690 = vrot.slane %v1687, 6
    %v1692 = vsel %vm1688, %v550, %v1690
    %v1693 = vrot.slane %v1522, 2
    %v1695 = vsel %vm1688, %v712, %v1693
    %v1696 = vrot.slane %v1357, 6
    %v1698 = vsel %vm1688, %v877, %v1696
    %v1700 = vrot.slane %v1195, 2
    %v1702 = vsel %vm1688, %v1042, %v1700
    %v1703 = vsel %vm1688, %v1195, %v1044
    %v1704 = vrot.slane %v877, 2
    %v1706 = vsel %vm1688, %v1357, %v1704
    %v1707 = vrot.slane %v712, 6
    %v1709 = vsel %vm1688, %v1522, %v1707
    %v1711 = vrot.slane %v550, 2
    %v1713 = vsel %vm1688, %v1687, %v1711
    %v1715 = vrot.slane %v1695, 2
    %v1718 = vrot.slane %v1698, 4
    %v1721 = vrot.slane %v1702, 6
    %v1724 = vrot.slane %v1706, 2
    %v1727 = vrot.slane %v1709, 4
    %v1730 = vrot.slane %v1713, 6
    %vm1732 = vcmask 517120
    %1733 = vst.msk [vmem:[#allocation11] sm:$0x3] %vm1732, %v1692
    %1734 = vst.msk [vmem:[#allocation11 + $0x2] sm:$0x3] %vm1732, %v1715
    %1735 = vst.msk [vmem:[#allocation11 + $0x4] sm:$0x3] %vm1732, %v1718
    %1736 = vst.msk [vmem:[#allocation11 + $0x6] sm:$0x3] %vm1732, %v1721
    %1737 = vst.msk [vmem:[#allocation11 + $0x8] sm:$0x3] %vm1732, %v1703
    %1738 = vst.msk [vmem:[#allocation11 + $0xa] sm:$0x3] %vm1732, %v1724
    %1739 = vst.msk [vmem:[#allocation11 + $0xc] sm:$0x3] %vm1732, %v1727
    %1740 = vst.msk [vmem:[#allocation11 + $0xe] sm:$0x3] %vm1732, %v1730
    // Predicated region
    $region46: #{rnn_encoder_forward.1} parent=1 // pred_check
      _
    $region47: #{rnn_encoder_forward.1} parent=1 // pred_check_branch
      %1742 = sbr.rel (0) target = $region49
    $region48: #{rnn_encoder_forward.1} parent=1 // pred_region
      %1744 = vsyncadd [#allocation4], 0
      %s1745 = sshll.u32 [#allocation11], 4
      %s1746 = int_to_ptr.vmem [resolvable:$true] %s1745
      %s1747 = sshll.u32 %s6, 4
      %s1748 = int_to_ptr.hbm [resolvable:$true] %s1747
      %1753 = dma.vmem_to_hbm [thread:$0]  %s1746, 256, %s1748, [#allocation4], 32, 32, 2
    $region49: #{rnn_encoder_forward.1} parent=1 // pred_fallthru
      _
    // Predicated region
    $region50: #{rnn_encoder_forward.1} parent=1 // pred_check
      _
    $region51: #{rnn_encoder_forward.1} parent=1 // pred_check_branch
      %1755 = sbr.rel (0) target = $region53
    $region52: #{rnn_encoder_forward.1} parent=1 // pred_region
      %1757 = dma.done [#allocation4], 256
    $region53: #{rnn_encoder_forward.1} parent=1 // pred_fallthru
      _
    %1758 = vsyncpa [#allocation3], 1
    %1759 = vsyncpa [#allocation6], 1
    %1760 = vsyncpa [#allocation9], 1
    %1761 = vsyncpa [#allocation4], 1

</llo_original>
